<compile_context>
chip_gen: v5e
topology: v5e:2x2
jax: 0.10.0
libtpu: 0.0.40
codegen_flags: <defaults>
</compile_context>

<pallas_src>
import functools

import jax
import jax.numpy as jnp
from jax import lax
from jax.experimental import pallas as pl
from jax.experimental.pallas import tpu as pltpu

EPS = 1e-5


# ----------------------------------------------------------------------------
# Fused Pallas kernel (channels-first, lane-dense)
# ----------------------------------------------------------------------------
def _fused_block_kernel(x_ref, w1_ref, g1_ref, b1_ref,
                        wdw_ref, g2_ref, b2_ref,
                        se1w_ref, se1b_ref, se2w_ref, se2b_ref,
                        w3_ref, g3_ref, b3_ref,
                        o_ref, xpad_scr,
                        *, B, H, W, K, stride, do_expand, shortcut):
    f32 = jnp.float32
    pad = (K - 1) // 2
    Ho = (H + 2 * pad - K) // stride + 1
    Wo = (W + 2 * pad - K) // stride + 1
    S, S2 = H * W, Ho * Wo
    E = wdw_ref.shape[0]                 # expanded channels (sublane axis)
    Cout = w3_ref.shape[0]
    halo_l = pad * W + pad               # left row-halo (zeros) in lanes
    halo_r = (K - 1 - pad) * W + (K - 1 - pad)
    Spad = S + halo_l + halo_r

    # ---- stage 1: 1x1 expansion.  x_ref[b] is (Cin, S) channels-first; the
    #      matmul w1 @ x keeps channels on sublanes and spatial on lanes.
    if do_expand:
        w1 = w1_ref[...]                                        # (E, Cin)
        ys, s1, q1 = [], 0.0, 0.0
        for b in range(B):                                      # B tiny & static
            y = jnp.dot(w1, x_ref[b], preferred_element_type=f32)   # (E, S)
            ys.append(y)
            s1 = s1 + y.sum(axis=1, keepdims=True)              # one-pass BN1
            q1 = q1 + (y * y).sum(axis=1, keepdims=True)
        n1 = float(B * S)
        mean1 = s1 / n1
        var1 = q1 / n1 - mean1 * mean1
        scale1 = g1_ref[...] * lax.rsqrt(var1 + EPS)            # (E, 1)
        shift1 = b1_ref[...] - mean1 * scale1
        scale1b = jnp.broadcast_to(scale1, (E, S))              # hoisted
        shift1b = jnp.broadcast_to(shift1, (E, S))
        acts1 = []
        for y in ys:
            z = y * scale1b + shift1b
            acts1.append(z * jax.nn.sigmoid(z))                 # swish, (E, S)
    else:
        acts1 = [x_ref[b] for b in range(B)]                    # identity

    # ---- stage 2: depthwise KxK conv.  Channels on sublanes, spatial on lanes.
    #      Column-boundary validity is folded into per-tap weights (hoisted);
    #      row boundaries are handled by the zero row-halo in the scratch.
    col = lax.broadcasted_iota(jnp.int32, (1, S), 1) % W
    wmask = []
    for kh in range(K):
        for kw in range(K):
            t = kh * K + kw
            wcol = wdw_ref[:, t:t + 1]                          # (E, 1)
            dw = kw - pad
            if dw == 0:
                wmask.append(wcol)                              # lane-broadcast
            else:
                m = jnp.logical_and(col + dw >= 0, col + dw < W).astype(f32)
                wmask.append(wcol * m)                          # (E, S)

    if stride > 1:
        # Exact 0/1 subsampling matrix: full stride-1 output -> strided output.
        rows_i = lax.broadcasted_iota(jnp.int32, (S, S2), 0)
        q_i = lax.broadcasted_iota(jnp.int32, (S, S2), 1)
        tgt = (stride * (q_i // Wo)) * W + stride * (q_i % Wo)
        sel = (rows_i == tgt).astype(f32)                       # (S, S2)

    dws, s2s, q2s = [], 0.0, 0.0
    for b in range(B):
        # Zero ONLY the halo lanes, then place the activation once (lane-dense).
        if halo_l > 0:
            xpad_scr[b, :, 0:halo_l] = jnp.zeros((E, halo_l), f32)
        if halo_r > 0:
            xpad_scr[b, :, halo_l + S:Spad] = jnp.zeros((E, halo_r), f32)
        xpad_scr[b, :, halo_l:halo_l + S] = acts1[b]

        acc = jnp.zeros((E, S), f32)
        for kh in range(K):                                     # static taps
            for kw in range(K):
                start = kh * W + kw                             # static offset
                tap = xpad_scr[b, :, start:start + S]           # shifted slice
                acc = acc + tap * wmask[kh * K + kw]
        if stride > 1:
            acc = jnp.dot(acc, sel, preferred_element_type=f32)  # (E, S2)
        dws.append(acc)
        s2s = s2s + acc.sum(axis=1, keepdims=True)              # one-pass BN2
        q2s = q2s + (acc * acc).sum(axis=1, keepdims=True)

    n2 = float(B * S2)
    mean2 = s2s / n2
    var2 = q2s / n2 - mean2 * mean2
    scale2 = g2_ref[...] * lax.rsqrt(var2 + EPS)
    shift2 = b2_ref[...] - mean2 * scale2
    scale2b = jnp.broadcast_to(scale2, (E, S2))                 # hoisted
    shift2b = jnp.broadcast_to(shift2, (E, S2))

    # ---- stage 3 + 4: SE gate, then 1x1 projection emitted channels-first
    #      (no transpose / identity matmul anywhere).
    w3 = w3_ref[...]                                            # (Cout, E)
    se1w, se1b = se1w_ref[...], se1b_ref[...]
    se2w, se2b = se2w_ref[...], se2b_ref[...]
    inv_s2 = 1.0 / float(S2)

    z3s, s3s, q3s = [], 0.0, 0.0
    for b in range(B):
        z = dws[b] * scale2b + shift2b
        act2 = z * jax.nn.sigmoid(z)                            # (E, S2)

        pooled = act2.sum(axis=1, keepdims=True) * inv_s2       # (E, 1)
        s = jnp.dot(se1w, pooled, preferred_element_type=f32) + se1b   # (SEp,1)
        s = s * jax.nn.sigmoid(s)
        g = jnp.dot(se2w, s, preferred_element_type=f32) + se2b        # (E, 1)
        gate = jax.nn.sigmoid(g)
        scaled = act2 * gate                                    # lane-broadcast

        z3 = jnp.dot(w3, scaled, preferred_element_type=f32)    # (Cout, S2)
        z3s.append(z3)
        s3s = s3s + z3.sum(axis=1, keepdims=True)               # one-pass BN3
        q3s = q3s + (z3 * z3).sum(axis=1, keepdims=True)

    n3 = float(B * S2)
    mean3 = s3s / n3
    var3 = q3s / n3 - mean3 * mean3
    scale3 = g3_ref[...] * lax.rsqrt(var3 + EPS)
    shift3 = b3_ref[...] - mean3 * scale3
    scale3b = jnp.broadcast_to(scale3, (Cout, S2))              # hoisted
    shift3b = jnp.broadcast_to(shift3, (Cout, S2))

    for b in range(B):
        out = z3s[b] * scale3b + shift3b
        if shortcut:
            out = out + x_ref[b]                                # channels-first
        o_ref[b] = out                                          # lane-dense store


# ----------------------------------------------------------------------------
# Wrapper: only free reshapes around a single pallas_call
# ----------------------------------------------------------------------------
def block_forward(x_nchw, params, *, kernel_size, stride, expand_ratio, shortcut):
    x = x_nchw.astype(jnp.float32)
    B, Cin, H, W = x.shape
    K = kernel_size
    pad = (K - 1) // 2
    Ho = (H + 2 * pad - K) // stride + 1
    Wo = (W + 2 * pad - K) // stride + 1
    E = params["w_dw"].shape[0]
    Cout = params["w3"].shape[0]
    halo_l = pad * W + pad
    halo_r = (K - 1 - pad) * W + (K - 1 - pad)
    Spad = H * W + halo_l + halo_r

    if expand_ratio == 1:
        # conv1/bn1/swish are skipped inside the kernel; pass unused dummies.
        w1 = jnp.zeros((E, Cin), jnp.float32)
        g1 = jnp.ones((E, 1), jnp.float32)
        b1 = jnp.zeros((E, 1), jnp.float32)
    else:
        w1, g1, b1 = params["w1"], params["g1"], params["b1"]

    x_cf = x.reshape(B, Cin, H * W)          # free reshape of NCHW, lane-dense

    kernel = functools.partial(
        _fused_block_kernel, B=B, H=H, W=W, K=K, stride=stride,
        do_expand=(expand_ratio != 1), shortcut=shortcut)

    vmem_spec = pl.BlockSpec(memory_space=pltpu.MemorySpace.VMEM)
    out_cf = pl.pallas_call(
        kernel,
        out_shape=jax.ShapeDtypeStruct((B, Cout, Ho * Wo), jnp.float32),
        in_specs=[vmem_spec] * 14,
        out_specs=vmem_spec,
        scratch_shapes=[pltpu.VMEM((B, E, Spad), jnp.float32)],
        compiler_params=pltpu.CompilerParams(
            vmem_limit_bytes=32 * 1024 * 1024),
    )(x_cf, w1, g1, b1,
      params["w_dw"], params["g2"], params["b2"],
      params["se1_w"], params["se1_b"], params["se2_w"], params["se2_b"],
      params["w3"], params["g3"], params["b3"])

    return out_cf.reshape(B, Cout, Ho, Wo)   # free reshape back to NCHW


# ----------------------------------------------------------------------------
# Pure-JAX reference (independent path for correctness check)
# ----------------------------------------------------------------------------
def reference_forward(x_nchw, params, *, kernel_size, stride, expand_ratio, shortcut):
    x = jnp.transpose(x_nchw, (0, 2, 3, 1)).astype(jnp.float32)

    def bn(y, g, b):
        mean = jnp.mean(y, axis=(0, 1, 2), keepdims=True)
        var = jnp.mean((y - mean) ** 2, axis=(0, 1, 2), keepdims=True)
        return ((y - mean) * lax.rsqrt(var + EPS) * g.reshape(1, 1, 1, -1)
                + b.reshape(1, 1, 1, -1))

    sw = lambda z: z * jax.nn.sigmoid(z)

    if expand_ratio == 1:
        out = x
    else:
        y = jnp.einsum("bhwc,ec->bhwe", x, params["w1"])
        out = sw(bn(y, params["g1"], params["b1"]))

    C = out.shape[-1]
    K = kernel_size
    pad = (K - 1) // 2
    wdw_hwio = jnp.transpose(params["w_dw"].reshape(C, K, K), (1, 2, 0))[:, :, None, :]
    y = lax.conv_general_dilated(
        out, wdw_hwio, (stride, stride), ((pad, pad), (pad, pad)),
        dimension_numbers=("NHWC", "HWIO", "NHWC"), feature_group_count=C)
    out = sw(bn(y, params["g2"], params["b2"]))

    pooled = jnp.mean(out, axis=(1, 2))                          # (B, C)
    s = sw(pooled @ params["se1_w"].T + params["se1_b"].reshape(1, -1))
    s = jax.nn.sigmoid(s @ params["se2_w"].T + params["se2_b"].reshape(1, -1))
    out = out * s[:, None, None, :]

    y = jnp.einsum("bhwc,oc->bhwo", out, params["w3"])
    out = bn(y, params["g3"], params["b3"])
    if shortcut:
        out = out + x
    return jnp.transpose(out, (0, 3, 1, 2))


# ----------------------------------------------------------------------------
# Deterministic parameter construction + test
# ----------------------------------------------------------------------------
def make_params(key, in_planes, out_planes, kernel_size, expand_ratio, se_ratio):
    planes = expand_ratio * in_planes
    se_planes = max(1, int(planes * se_ratio))
    ks = jax.random.split(key, 13)
    n = lambda k, shape, s=0.1: s * jax.random.normal(k, shape, jnp.float32)
    return dict(
        # conv1 (1x1, no bias): PyTorch (planes, in_planes, 1, 1) -> (planes, in_planes)
        w1=n(ks[0], (planes, in_planes)),
        g1=1.0 + n(ks[1], (planes, 1)), b1=n(ks[2], (planes, 1)),
        # depthwise conv2: PyTorch (planes, 1, K, K) -> (planes, K*K)
        w_dw=n(ks[3], (planes, kernel_size * kernel_size)),
        g2=1.0 + n(ks[4], (planes, 1)), b2=n(ks[5], (planes, 1)),
        # se1/se2 (1x1, with bias), PyTorch (out, in) layouts
        se1_w=n(ks[6], (se_planes, planes)), se1_b=n(ks[7], (se_planes, 1)),
        se2_w=n(ks[8], (planes, se_planes)), se2_b=n(ks[9], (planes, 1)),
        # conv3 (1x1, no bias): PyTorch (out_planes, planes, 1, 1) -> (out_planes, planes)
        w3=n(ks[10], (out_planes, planes)),
        g3=1.0 + n(ks[11], (out_planes, 1)), b3=n(ks[12], (out_planes, 1)),
    )


if __name__ == "__main__":
    # Block(in_planes=8, out_planes=8, kernel_size=3, stride=1,
    #       expand_ratio=2, se_ratio=0.25, drop_rate=0.0)
    in_planes, out_planes = 8, 8
    kernel_size, stride = 3, 1
    expand_ratio, se_ratio, drop_rate = 2, 0.25, 0.0
    shortcut = (stride == 1 and in_planes == out_planes)

    key = jax.random.PRNGKey(0)
    k_params, k_x = jax.random.split(key)
    params = make_params(k_params, in_planes, out_planes, kernel_size,
                         expand_ratio, se_ratio)

    x = jax.random.normal(k_x, (2, in_planes, 16, 16), jnp.float32)   # NCHW

    out = block_forward(x, params, kernel_size=kernel_size, stride=stride,
                        expand_ratio=expand_ratio, shortcut=shortcut)
    out = jax.block_until_ready(out)

    ref = reference_forward(x, params, kernel_size=kernel_size, stride=stride,
                            expand_ratio=expand_ratio, shortcut=shortcut)
    ref = jax.block_until_ready(ref)

    assert out.shape == (2, out_planes, 16, 16)
    assert jnp.allclose(out, ref, atol=1e-3, rtol=1e-3), (
        float(jnp.max(jnp.abs(out - ref))))
    print("KERNEL_OK")
</pallas_src>

<mosaic_0001>
module attributes {stable_mosaic.version = 11 : i64} {
  func.func @_fused_block_kernel(%arg0: memref<2x8x256xf32, #tpu.memory_space<vmem>>, %arg1: memref<16x8xf32, #tpu.memory_space<vmem>>, %arg2: memref<16x1xf32, #tpu.memory_space<vmem>>, %arg3: memref<16x1xf32, #tpu.memory_space<vmem>>, %arg4: memref<16x9xf32, #tpu.memory_space<vmem>>, %arg5: memref<16x1xf32, #tpu.memory_space<vmem>>, %arg6: memref<16x1xf32, #tpu.memory_space<vmem>>, %arg7: memref<4x16xf32, #tpu.memory_space<vmem>>, %arg8: memref<4x1xf32, #tpu.memory_space<vmem>>, %arg9: memref<16x4xf32, #tpu.memory_space<vmem>>, %arg10: memref<16x1xf32, #tpu.memory_space<vmem>>, %arg11: memref<8x16xf32, #tpu.memory_space<vmem>>, %arg12: memref<8x1xf32, #tpu.memory_space<vmem>>, %arg13: memref<8x1xf32, #tpu.memory_space<vmem>>, %arg14: memref<2x8x256xf32, #tpu.memory_space<vmem>>, %arg15: memref<2x16x290xf32, #tpu.memory_space<vmem>>) attributes {dimension_semantics = [], scalar_prefetch = 0 : i64, scratch_operands = 1 : i64, tpu.core_type = #tpu.core_type<tc>} {
    %c0 = arith.constant 0 : index
    %c0_0 = arith.constant 0 : index
    %0 = vector.load %arg1[%c0, %c0_0] : memref<16x8xf32, #tpu.memory_space<vmem>>, vector<16x8xf32>
    %c0_1 = arith.constant 0 : index
    %c0_2 = arith.constant 0 : index
    %c0_3 = arith.constant 0 : index
    %1 = vector.load %arg0[%c0_1, %c0_2, %c0_3] : memref<2x8x256xf32, #tpu.memory_space<vmem>>, vector<1x8x256xf32>
    %2 = vector.shape_cast %1 : vector<1x8x256xf32> to vector<8x256xf32>
    %cst = arith.constant dense<0.000000e+00> : vector<16x256xf32>
    %3 = tpu.matmul %0, %2, %cst {dimension_numbers = #tpu.dot_dimension_numbers<[1], [0], [0], [1], [0, 0, 1, 1], [], []>} : vector<16x8xf32>, vector<8x256xf32>, vector<16x256xf32> -> vector<16x256xf32>
    %cst_4 = arith.constant dense<0.000000e+00> : vector<16xf32>
    %4 = vector.multi_reduction <add>, %3, %cst_4 [1] : vector<16x256xf32> to vector<16xf32>
    %5 = vector.shape_cast %4 : vector<16xf32> to vector<16x1xf32>
    %cst_5 = arith.constant 0.000000e+00 : f32
    %6 = vector.broadcast %cst_5 : f32 to vector<16x1xf32>
    %7 = arith.addf %6, %5 : vector<16x1xf32>
    %8 = arith.mulf %3, %3 : vector<16x256xf32>
    %cst_6 = arith.constant dense<0.000000e+00> : vector<16xf32>
    %9 = vector.multi_reduction <add>, %8, %cst_6 [1] : vector<16x256xf32> to vector<16xf32>
    %10 = vector.shape_cast %9 : vector<16xf32> to vector<16x1xf32>
    %cst_7 = arith.constant 0.000000e+00 : f32
    %11 = vector.broadcast %cst_7 : f32 to vector<16x1xf32>
    %12 = arith.addf %11, %10 : vector<16x1xf32>
    %c1 = arith.constant 1 : index
    %c0_8 = arith.constant 0 : index
    %c0_9 = arith.constant 0 : index
    %13 = vector.load %arg0[%c1, %c0_8, %c0_9] : memref<2x8x256xf32, #tpu.memory_space<vmem>>, vector<1x8x256xf32>
    %14 = vector.shape_cast %13 : vector<1x8x256xf32> to vector<8x256xf32>
    %cst_10 = arith.constant dense<0.000000e+00> : vector<16x256xf32>
    %15 = tpu.matmul %0, %14, %cst_10 {dimension_numbers = #tpu.dot_dimension_numbers<[1], [0], [0], [1], [0, 0, 1, 1], [], []>} : vector<16x8xf32>, vector<8x256xf32>, vector<16x256xf32> -> vector<16x256xf32>
    %cst_11 = arith.constant dense<0.000000e+00> : vector<16xf32>
    %16 = vector.multi_reduction <add>, %15, %cst_11 [1] : vector<16x256xf32> to vector<16xf32>
    %17 = vector.shape_cast %16 : vector<16xf32> to vector<16x1xf32>
    %18 = arith.addf %7, %17 : vector<16x1xf32>
    %19 = arith.mulf %15, %15 : vector<16x256xf32>
    %cst_12 = arith.constant dense<0.000000e+00> : vector<16xf32>
    %20 = vector.multi_reduction <add>, %19, %cst_12 [1] : vector<16x256xf32> to vector<16xf32>
    %21 = vector.shape_cast %20 : vector<16xf32> to vector<16x1xf32>
    %22 = arith.addf %12, %21 : vector<16x1xf32>
    %cst_13 = arith.constant 5.120000e+02 : f32
    %23 = vector.broadcast %cst_13 : f32 to vector<16x1xf32>
    %24 = arith.divf %18, %23 : vector<16x1xf32>
    %cst_14 = arith.constant 5.120000e+02 : f32
    %25 = vector.broadcast %cst_14 : f32 to vector<16x1xf32>
    %26 = arith.divf %22, %25 : vector<16x1xf32>
    %27 = arith.mulf %24, %24 : vector<16x1xf32>
    %28 = arith.subf %26, %27 : vector<16x1xf32>
    %c0_15 = arith.constant 0 : index
    %c0_16 = arith.constant 0 : index
    %29 = vector.load %arg2[%c0_15, %c0_16] : memref<16x1xf32, #tpu.memory_space<vmem>>, vector<16x1xf32>
    %cst_17 = arith.constant 9.99999974E-6 : f32
    %30 = vector.broadcast %cst_17 : f32 to vector<16x1xf32>
    %31 = arith.addf %28, %30 : vector<16x1xf32>
    %32 = math.rsqrt %31 : vector<16x1xf32>
    %33 = arith.mulf %29, %32 : vector<16x1xf32>
    %c0_18 = arith.constant 0 : index
    %c0_19 = arith.constant 0 : index
    %34 = vector.load %arg3[%c0_18, %c0_19] : memref<16x1xf32, #tpu.memory_space<vmem>>, vector<16x1xf32>
    %35 = arith.mulf %24, %33 : vector<16x1xf32>
    %36 = arith.subf %34, %35 : vector<16x1xf32>
    %37 = vector.shape_cast %33 : vector<16x1xf32> to vector<16x1xf32>
    %38 = vector.broadcast %37 : vector<16x1xf32> to vector<16x256xf32>
    %39 = vector.shape_cast %36 : vector<16x1xf32> to vector<16x1xf32>
    %40 = vector.broadcast %39 : vector<16x1xf32> to vector<16x256xf32>
    %41 = arith.mulf %3, %38 : vector<16x256xf32>
    %42 = arith.addf %41, %40 : vector<16x256xf32>
    %43 = arith.negf %42 : vector<16x256xf32>
    %44 = math.exp %43 : vector<16x256xf32>
    %cst_20 = arith.constant 1.000000e+00 : f32
    %45 = vector.broadcast %cst_20 : f32 to vector<16x256xf32>
    %46 = arith.addf %45, %44 : vector<16x256xf32>
    %47 = arith.divf %45, %46 : vector<16x256xf32>
    %48 = arith.mulf %42, %47 : vector<16x256xf32>
    %49 = arith.mulf %15, %38 : vector<16x256xf32>
    %50 = arith.addf %49, %40 : vector<16x256xf32>
    %51 = arith.negf %50 : vector<16x256xf32>
    %52 = math.exp %51 : vector<16x256xf32>
    %cst_21 = arith.constant 1.000000e+00 : f32
    %53 = vector.broadcast %cst_21 : f32 to vector<16x256xf32>
    %54 = arith.addf %53, %52 : vector<16x256xf32>
    %55 = arith.divf %53, %54 : vector<16x256xf32>
    %56 = arith.mulf %50, %55 : vector<16x256xf32>
    %57 = tpu.iota {dimensions = array<i32: 1>} : vector<1x256xi32>
    %c16_i32 = arith.constant 16 : i32
    %c0_i32 = arith.constant 0 : i32
    %58 = arith.cmpi eq, %c16_i32, %c0_i32 : i32
    %c1_i32 = arith.constant 1 : i32
    %59 = arith.select %58, %c1_i32, %c16_i32 : i32
    %60 = vector.broadcast %59 : i32 to vector<1x256xi32>
    %61 = arith.remsi %57, %60 : vector<1x256xi32>
    %c0_i32_22 = arith.constant 0 : i32
    %62 = vector.broadcast %c0_i32_22 : i32 to vector<1x256xi32>
    %63 = arith.cmpi ne, %61, %62 : vector<1x256xi32>
    %c0_i32_23 = arith.constant 0 : i32
    %64 = vector.broadcast %c0_i32_23 : i32 to vector<1x256xi32>
    %65 = arith.cmpi slt, %61, %64 : vector<1x256xi32>
    %c0_i32_24 = arith.constant 0 : i32
    %66 = arith.cmpi slt, %59, %c0_i32_24 : i32
    %67 = vector.broadcast %66 : i1 to vector<1x256xi1>
    %68 = vector.broadcast %67 : vector<1x256xi1> to vector<1x256xi1>
    %69 = arith.xori %65, %68 : vector<1x256xi1>
    %70 = arith.andi %69, %63 : vector<1x256xi1>
    %71 = vector.broadcast %59 : i32 to vector<1x256xi32>
    %72 = arith.addi %61, %71 : vector<1x256xi32>
    %73 = arith.select %70, %72, %61 : vector<1x256xi1>, vector<1x256xi32>
    %c0_25 = arith.constant 0 : index
    %c0_26 = arith.constant 0 : index
    %74 = vector.load %arg4[%c0_25, %c0_26] : memref<16x9xf32, #tpu.memory_space<vmem>>, vector<16x1xf32>
    %c-1_i32 = arith.constant -1 : i32
    %75 = vector.broadcast %c-1_i32 : i32 to vector<1x256xi32>
    %76 = arith.addi %73, %75 : vector<1x256xi32>
    %c0_i32_27 = arith.constant 0 : i32
    %77 = vector.broadcast %c0_i32_27 : i32 to vector<1x256xi32>
    %78 = arith.cmpi sge, %76, %77 : vector<1x256xi32>
    %c-1_i32_28 = arith.constant -1 : i32
    %79 = vector.broadcast %c-1_i32_28 : i32 to vector<1x256xi32>
    %80 = arith.addi %73, %79 : vector<1x256xi32>
    %c16_i32_29 = arith.constant 16 : i32
    %81 = vector.broadcast %c16_i32_29 : i32 to vector<1x256xi32>
    %82 = arith.cmpi slt, %80, %81 : vector<1x256xi32>
    %83 = arith.andi %78, %82 : vector<1x256xi1>
    %84 = arith.extui %83 : vector<1x256xi1> to vector<1x256xi32>
    %85 = arith.sitofp %84 : vector<1x256xi32> to vector<1x256xf32>
    %86 = vector.broadcast %74 : vector<16x1xf32> to vector<16x256xf32>
    %87 = vector.broadcast %85 : vector<1x256xf32> to vector<16x256xf32>
    %88 = arith.mulf %86, %87 : vector<16x256xf32>
    %c0_30 = arith.constant 0 : index
    %c1_31 = arith.constant 1 : index
    %89 = vector.load %arg4[%c0_30, %c1_31] : memref<16x9xf32, #tpu.memory_space<vmem>>, vector<16x1xf32>
    %c0_32 = arith.constant 0 : index
    %c2 = arith.constant 2 : index
    %90 = vector.load %arg4[%c0_32, %c2] : memref<16x9xf32, #tpu.memory_space<vmem>>, vector<16x1xf32>
    %c1_i32_33 = arith.constant 1 : i32
    %91 = vector.broadcast %c1_i32_33 : i32 to vector<1x256xi32>
    %92 = arith.addi %73, %91 : vector<1x256xi32>
    %c0_i32_34 = arith.constant 0 : i32
    %93 = vector.broadcast %c0_i32_34 : i32 to vector<1x256xi32>
    %94 = arith.cmpi sge, %92, %93 : vector<1x256xi32>
    %c1_i32_35 = arith.constant 1 : i32
    %95 = vector.broadcast %c1_i32_35 : i32 to vector<1x256xi32>
    %96 = arith.addi %73, %95 : vector<1x256xi32>
    %c16_i32_36 = arith.constant 16 : i32
    %97 = vector.broadcast %c16_i32_36 : i32 to vector<1x256xi32>
    %98 = arith.cmpi slt, %96, %97 : vector<1x256xi32>
    %99 = arith.andi %94, %98 : vector<1x256xi1>
    %100 = arith.extui %99 : vector<1x256xi1> to vector<1x256xi32>
    %101 = arith.sitofp %100 : vector<1x256xi32> to vector<1x256xf32>
    %102 = vector.broadcast %90 : vector<16x1xf32> to vector<16x256xf32>
    %103 = vector.broadcast %101 : vector<1x256xf32> to vector<16x256xf32>
    %104 = arith.mulf %102, %103 : vector<16x256xf32>
    %c0_37 = arith.constant 0 : index
    %c3 = arith.constant 3 : index
    %105 = vector.load %arg4[%c0_37, %c3] : memref<16x9xf32, #tpu.memory_space<vmem>>, vector<16x1xf32>
    %c-1_i32_38 = arith.constant -1 : i32
    %106 = vector.broadcast %c-1_i32_38 : i32 to vector<1x256xi32>
    %107 = arith.addi %73, %106 : vector<1x256xi32>
    %c0_i32_39 = arith.constant 0 : i32
    %108 = vector.broadcast %c0_i32_39 : i32 to vector<1x256xi32>
    %109 = arith.cmpi sge, %107, %108 : vector<1x256xi32>
    %c-1_i32_40 = arith.constant -1 : i32
    %110 = vector.broadcast %c-1_i32_40 : i32 to vector<1x256xi32>
    %111 = arith.addi %73, %110 : vector<1x256xi32>
    %c16_i32_41 = arith.constant 16 : i32
    %112 = vector.broadcast %c16_i32_41 : i32 to vector<1x256xi32>
    %113 = arith.cmpi slt, %111, %112 : vector<1x256xi32>
    %114 = arith.andi %109, %113 : vector<1x256xi1>
    %115 = arith.extui %114 : vector<1x256xi1> to vector<1x256xi32>
    %116 = arith.sitofp %115 : vector<1x256xi32> to vector<1x256xf32>
    %117 = vector.broadcast %105 : vector<16x1xf32> to vector<16x256xf32>
    %118 = vector.broadcast %116 : vector<1x256xf32> to vector<16x256xf32>
    %119 = arith.mulf %117, %118 : vector<16x256xf32>
    %c0_42 = arith.constant 0 : index
    %c4 = arith.constant 4 : index
    %120 = vector.load %arg4[%c0_42, %c4] : memref<16x9xf32, #tpu.memory_space<vmem>>, vector<16x1xf32>
    %c0_43 = arith.constant 0 : index
    %c5 = arith.constant 5 : index
    %121 = vector.load %arg4[%c0_43, %c5] : memref<16x9xf32, #tpu.memory_space<vmem>>, vector<16x1xf32>
    %c1_i32_44 = arith.constant 1 : i32
    %122 = vector.broadcast %c1_i32_44 : i32 to vector<1x256xi32>
    %123 = arith.addi %73, %122 : vector<1x256xi32>
    %c0_i32_45 = arith.constant 0 : i32
    %124 = vector.broadcast %c0_i32_45 : i32 to vector<1x256xi32>
    %125 = arith.cmpi sge, %123, %124 : vector<1x256xi32>
    %c1_i32_46 = arith.constant 1 : i32
    %126 = vector.broadcast %c1_i32_46 : i32 to vector<1x256xi32>
    %127 = arith.addi %73, %126 : vector<1x256xi32>
    %c16_i32_47 = arith.constant 16 : i32
    %128 = vector.broadcast %c16_i32_47 : i32 to vector<1x256xi32>
    %129 = arith.cmpi slt, %127, %128 : vector<1x256xi32>
    %130 = arith.andi %125, %129 : vector<1x256xi1>
    %131 = arith.extui %130 : vector<1x256xi1> to vector<1x256xi32>
    %132 = arith.sitofp %131 : vector<1x256xi32> to vector<1x256xf32>
    %133 = vector.broadcast %121 : vector<16x1xf32> to vector<16x256xf32>
    %134 = vector.broadcast %132 : vector<1x256xf32> to vector<16x256xf32>
    %135 = arith.mulf %133, %134 : vector<16x256xf32>
    %c0_48 = arith.constant 0 : index
    %c6 = arith.constant 6 : index
    %136 = vector.load %arg4[%c0_48, %c6] : memref<16x9xf32, #tpu.memory_space<vmem>>, vector<16x1xf32>
    %c-1_i32_49 = arith.constant -1 : i32
    %137 = vector.broadcast %c-1_i32_49 : i32 to vector<1x256xi32>
    %138 = arith.addi %73, %137 : vector<1x256xi32>
    %c0_i32_50 = arith.constant 0 : i32
    %139 = vector.broadcast %c0_i32_50 : i32 to vector<1x256xi32>
    %140 = arith.cmpi sge, %138, %139 : vector<1x256xi32>
    %c-1_i32_51 = arith.constant -1 : i32
    %141 = vector.broadcast %c-1_i32_51 : i32 to vector<1x256xi32>
    %142 = arith.addi %73, %141 : vector<1x256xi32>
    %c16_i32_52 = arith.constant 16 : i32
    %143 = vector.broadcast %c16_i32_52 : i32 to vector<1x256xi32>
    %144 = arith.cmpi slt, %142, %143 : vector<1x256xi32>
    %145 = arith.andi %140, %144 : vector<1x256xi1>
    %146 = arith.extui %145 : vector<1x256xi1> to vector<1x256xi32>
    %147 = arith.sitofp %146 : vector<1x256xi32> to vector<1x256xf32>
    %148 = vector.broadcast %136 : vector<16x1xf32> to vector<16x256xf32>
    %149 = vector.broadcast %147 : vector<1x256xf32> to vector<16x256xf32>
    %150 = arith.mulf %148, %149 : vector<16x256xf32>
    %c0_53 = arith.constant 0 : index
    %c7 = arith.constant 7 : index
    %151 = vector.load %arg4[%c0_53, %c7] : memref<16x9xf32, #tpu.memory_space<vmem>>, vector<16x1xf32>
    %c0_54 = arith.constant 0 : index
    %c8 = arith.constant 8 : index
    %152 = vector.load %arg4[%c0_54, %c8] : memref<16x9xf32, #tpu.memory_space<vmem>>, vector<16x1xf32>
    %c1_i32_55 = arith.constant 1 : i32
    %153 = vector.broadcast %c1_i32_55 : i32 to vector<1x256xi32>
    %154 = arith.addi %73, %153 : vector<1x256xi32>
    %c0_i32_56 = arith.constant 0 : i32
    %155 = vector.broadcast %c0_i32_56 : i32 to vector<1x256xi32>
    %156 = arith.cmpi sge, %154, %155 : vector<1x256xi32>
    %c1_i32_57 = arith.constant 1 : i32
    %157 = vector.broadcast %c1_i32_57 : i32 to vector<1x256xi32>
    %158 = arith.addi %73, %157 : vector<1x256xi32>
    %c16_i32_58 = arith.constant 16 : i32
    %159 = vector.broadcast %c16_i32_58 : i32 to vector<1x256xi32>
    %160 = arith.cmpi slt, %158, %159 : vector<1x256xi32>
    %161 = arith.andi %156, %160 : vector<1x256xi1>
    %162 = arith.extui %161 : vector<1x256xi1> to vector<1x256xi32>
    %163 = arith.sitofp %162 : vector<1x256xi32> to vector<1x256xf32>
    %164 = vector.broadcast %152 : vector<16x1xf32> to vector<16x256xf32>
    %165 = vector.broadcast %163 : vector<1x256xf32> to vector<16x256xf32>
    %166 = arith.mulf %164, %165 : vector<16x256xf32>
    %cst_59 = arith.constant 0.000000e+00 : f32
    %167 = vector.broadcast %cst_59 : f32 to vector<16x17xf32>
    %c0_60 = arith.constant 0 : index
    %c0_61 = arith.constant 0 : index
    %c0_62 = arith.constant 0 : index
    %168 = vector.load %arg15[%c0_60, %c0_61, %c0_62] : memref<2x16x290xf32, #tpu.memory_space<vmem>>, vector<1x16x17xf32>
    %169 = vector.shape_cast %168 : vector<1x16x17xf32> to vector<16x17xf32>
    %170 = vector.shape_cast %167 : vector<16x17xf32> to vector<1x16x17xf32>
    tpu.vector_store %arg15[%c0_60, %c0_61, %c0_62], %170 {strides = array<i32>} : memref<2x16x290xf32, #tpu.memory_space<vmem>>, vector<1x16x17xf32>,
    %cst_63 = arith.constant 0.000000e+00 : f32
    %171 = vector.broadcast %cst_63 : f32 to vector<16x17xf32>
    %c0_64 = arith.constant 0 : index
    %c0_65 = arith.constant 0 : index
    %c273 = arith.constant 273 : index
    %172 = vector.load %arg15[%c0_64, %c0_65, %c273] : memref<2x16x290xf32, #tpu.memory_space<vmem>>, vector<1x16x17xf32>
    %173 = vector.shape_cast %172 : vector<1x16x17xf32> to vector<16x17xf32>
    %174 = vector.shape_cast %171 : vector<16x17xf32> to vector<1x16x17xf32>
    tpu.vector_store %arg15[%c0_64, %c0_65, %c273], %174 {strides = array<i32>} : memref<2x16x290xf32, #tpu.memory_space<vmem>>, vector<1x16x17xf32>,
    %c0_66 = arith.constant 0 : index
    %c0_67 = arith.constant 0 : index
    %c17 = arith.constant 17 : index
    %175 = vector.load %arg15[%c0_66, %c0_67, %c17] : memref<2x16x290xf32, #tpu.memory_space<vmem>>, vector<1x16x256xf32>
    %176 = vector.shape_cast %175 : vector<1x16x256xf32> to vector<16x256xf32>
    %177 = vector.shape_cast %48 : vector<16x256xf32> to vector<1x16x256xf32>
    tpu.vector_store %arg15[%c0_66, %c0_67, %c17], %177 {strides = array<i32>} : memref<2x16x290xf32, #tpu.memory_space<vmem>>, vector<1x16x256xf32>,
    %cst_68 = arith.constant 0.000000e+00 : f32
    %178 = vector.broadcast %cst_68 : f32 to vector<16x256xf32>
    %c0_69 = arith.constant 0 : index
    %c0_70 = arith.constant 0 : index
    %c0_71 = arith.constant 0 : index
    %179 = vector.load %arg15[%c0_69, %c0_70, %c0_71] : memref<2x16x290xf32, #tpu.memory_space<vmem>>, vector<1x16x256xf32>
    %180 = vector.shape_cast %179 : vector<1x16x256xf32> to vector<16x256xf32>
    %181 = arith.mulf %180, %88 : vector<16x256xf32>
    %182 = arith.addf %178, %181 : vector<16x256xf32>
    %c0_72 = arith.constant 0 : index
    %c0_73 = arith.constant 0 : index
    %c1_74 = arith.constant 1 : index
    %183 = vector.load %arg15[%c0_72, %c0_73, %c1_74] : memref<2x16x290xf32, #tpu.memory_space<vmem>>, vector<1x16x256xf32>
    %184 = vector.shape_cast %183 : vector<1x16x256xf32> to vector<16x256xf32>
    %185 = vector.broadcast %89 : vector<16x1xf32> to vector<16x256xf32>
    %186 = arith.mulf %184, %185 : vector<16x256xf32>
    %187 = arith.addf %182, %186 : vector<16x256xf32>
    %c0_75 = arith.constant 0 : index
    %c0_76 = arith.constant 0 : index
    %c2_77 = arith.constant 2 : index
    %188 = vector.load %arg15[%c0_75, %c0_76, %c2_77] : memref<2x16x290xf32, #tpu.memory_space<vmem>>, vector<1x16x256xf32>
    %189 = vector.shape_cast %188 : vector<1x16x256xf32> to vector<16x256xf32>
    %190 = arith.mulf %189, %104 : vector<16x256xf32>
    %191 = arith.addf %187, %190 : vector<16x256xf32>
    %c0_78 = arith.constant 0 : index
    %c0_79 = arith.constant 0 : index
    %c16 = arith.constant 16 : index
    %192 = vector.load %arg15[%c0_78, %c0_79, %c16] : memref<2x16x290xf32, #tpu.memory_space<vmem>>, vector<1x16x256xf32>
    %193 = vector.shape_cast %192 : vector<1x16x256xf32> to vector<16x256xf32>
    %194 = arith.mulf %193, %119 : vector<16x256xf32>
    %195 = arith.addf %191, %194 : vector<16x256xf32>
    %c0_80 = arith.constant 0 : index
    %c0_81 = arith.constant 0 : index
    %c17_82 = arith.constant 17 : index
    %196 = vector.load %arg15[%c0_80, %c0_81, %c17_82] : memref<2x16x290xf32, #tpu.memory_space<vmem>>, vector<1x16x256xf32>
    %197 = vector.shape_cast %196 : vector<1x16x256xf32> to vector<16x256xf32>
    %198 = vector.broadcast %120 : vector<16x1xf32> to vector<16x256xf32>
    %199 = arith.mulf %197, %198 : vector<16x256xf32>
    %200 = arith.addf %195, %199 : vector<16x256xf32>
    %c0_83 = arith.constant 0 : index
    %c0_84 = arith.constant 0 : index
    %c18 = arith.constant 18 : index
    %201 = vector.load %arg15[%c0_83, %c0_84, %c18] : memref<2x16x290xf32, #tpu.memory_space<vmem>>, vector<1x16x256xf32>
    %202 = vector.shape_cast %201 : vector<1x16x256xf32> to vector<16x256xf32>
    %203 = arith.mulf %202, %135 : vector<16x256xf32>
    %204 = arith.addf %200, %203 : vector<16x256xf32>
    %c0_85 = arith.constant 0 : index
    %c0_86 = arith.constant 0 : index
    %c32 = arith.constant 32 : index
    %205 = vector.load %arg15[%c0_85, %c0_86, %c32] : memref<2x16x290xf32, #tpu.memory_space<vmem>>, vector<1x16x256xf32>
    %206 = vector.shape_cast %205 : vector<1x16x256xf32> to vector<16x256xf32>
    %207 = arith.mulf %206, %150 : vector<16x256xf32>
    %208 = arith.addf %204, %207 : vector<16x256xf32>
    %c0_87 = arith.constant 0 : index
    %c0_88 = arith.constant 0 : index
    %c33 = arith.constant 33 : index
    %209 = vector.load %arg15[%c0_87, %c0_88, %c33] : memref<2x16x290xf32, #tpu.memory_space<vmem>>, vector<1x16x256xf32>
    %210 = vector.shape_cast %209 : vector<1x16x256xf32> to vector<16x256xf32>
    %211 = vector.broadcast %151 : vector<16x1xf32> to vector<16x256xf32>
    %212 = arith.mulf %210, %211 : vector<16x256xf32>
    %213 = arith.addf %208, %212 : vector<16x256xf32>
    %c0_89 = arith.constant 0 : index
    %c0_90 = arith.constant 0 : index
    %c34 = arith.constant 34 : index
    %214 = vector.load %arg15[%c0_89, %c0_90, %c34] : memref<2x16x290xf32, #tpu.memory_space<vmem>>, vector<1x16x256xf32>
    %215 = vector.shape_cast %214 : vector<1x16x256xf32> to vector<16x256xf32>
    %216 = arith.mulf %215, %166 : vector<16x256xf32>
    %217 = arith.addf %213, %216 : vector<16x256xf32>
    %cst_91 = arith.constant dense<0.000000e+00> : vector<16xf32>
    %218 = vector.multi_reduction <add>, %217, %cst_91 [1] : vector<16x256xf32> to vector<16xf32>
    %219 = vector.shape_cast %218 : vector<16xf32> to vector<16x1xf32>
    %cst_92 = arith.constant 0.000000e+00 : f32
    %220 = vector.broadcast %cst_92 : f32 to vector<16x1xf32>
    %221 = arith.addf %220, %219 : vector<16x1xf32>
    %222 = arith.mulf %217, %217 : vector<16x256xf32>
    %cst_93 = arith.constant dense<0.000000e+00> : vector<16xf32>
    %223 = vector.multi_reduction <add>, %222, %cst_93 [1] : vector<16x256xf32> to vector<16xf32>
    %224 = vector.shape_cast %223 : vector<16xf32> to vector<16x1xf32>
    %cst_94 = arith.constant 0.000000e+00 : f32
    %225 = vector.broadcast %cst_94 : f32 to vector<16x1xf32>
    %226 = arith.addf %225, %224 : vector<16x1xf32>
    %cst_95 = arith.constant 0.000000e+00 : f32
    %227 = vector.broadcast %cst_95 : f32 to vector<16x17xf32>
    %c1_96 = arith.constant 1 : index
    %c0_97 = arith.constant 0 : index
    %c0_98 = arith.constant 0 : index
    %228 = vector.load %arg15[%c1_96, %c0_97, %c0_98] : memref<2x16x290xf32, #tpu.memory_space<vmem>>, vector<1x16x17xf32>
    %229 = vector.shape_cast %228 : vector<1x16x17xf32> to vector<16x17xf32>
    %230 = vector.shape_cast %227 : vector<16x17xf32> to vector<1x16x17xf32>
    tpu.vector_store %arg15[%c1_96, %c0_97, %c0_98], %230 {strides = array<i32>} : memref<2x16x290xf32, #tpu.memory_space<vmem>>, vector<1x16x17xf32>,
    %cst_99 = arith.constant 0.000000e+00 : f32
    %231 = vector.broadcast %cst_99 : f32 to vector<16x17xf32>
    %c1_100 = arith.constant 1 : index
    %c0_101 = arith.constant 0 : index
    %c273_102 = arith.constant 273 : index
    %232 = vector.load %arg15[%c1_100, %c0_101, %c273_102] : memref<2x16x290xf32, #tpu.memory_space<vmem>>, vector<1x16x17xf32>
    %233 = vector.shape_cast %232 : vector<1x16x17xf32> to vector<16x17xf32>
    %234 = vector.shape_cast %231 : vector<16x17xf32> to vector<1x16x17xf32>
    tpu.vector_store %arg15[%c1_100, %c0_101, %c273_102], %234 {strides = array<i32>} : memref<2x16x290xf32, #tpu.memory_space<vmem>>, vector<1x16x17xf32>,
    %c1_103 = arith.constant 1 : index
    %c0_104 = arith.constant 0 : index
    %c17_105 = arith.constant 17 : index
    %235 = vector.load %arg15[%c1_103, %c0_104, %c17_105] : memref<2x16x290xf32, #tpu.memory_space<vmem>>, vector<1x16x256xf32>
    %236 = vector.shape_cast %235 : vector<1x16x256xf32> to vector<16x256xf32>
    %237 = vector.shape_cast %56 : vector<16x256xf32> to vector<1x16x256xf32>
    tpu.vector_store %arg15[%c1_103, %c0_104, %c17_105], %237 {strides = array<i32>} : memref<2x16x290xf32, #tpu.memory_space<vmem>>, vector<1x16x256xf32>,
    %cst_106 = arith.constant 0.000000e+00 : f32
    %238 = vector.broadcast %cst_106 : f32 to vector<16x256xf32>
    %c1_107 = arith.constant 1 : index
    %c0_108 = arith.constant 0 : index
    %c0_109 = arith.constant 0 : index
    %239 = vector.load %arg15[%c1_107, %c0_108, %c0_109] : memref<2x16x290xf32, #tpu.memory_space<vmem>>, vector<1x16x256xf32>
    %240 = vector.shape_cast %239 : vector<1x16x256xf32> to vector<16x256xf32>
    %241 = arith.mulf %240, %88 : vector<16x256xf32>
    %242 = arith.addf %238, %241 : vector<16x256xf32>
    %c1_110 = arith.constant 1 : index
    %c0_111 = arith.constant 0 : index
    %c1_112 = arith.constant 1 : index
    %243 = vector.load %arg15[%c1_110, %c0_111, %c1_112] : memref<2x16x290xf32, #tpu.memory_space<vmem>>, vector<1x16x256xf32>
    %244 = vector.shape_cast %243 : vector<1x16x256xf32> to vector<16x256xf32>
    %245 = vector.broadcast %89 : vector<16x1xf32> to vector<16x256xf32>
    %246 = arith.mulf %244, %245 : vector<16x256xf32>
    %247 = arith.addf %242, %246 : vector<16x256xf32>
    %c1_113 = arith.constant 1 : index
    %c0_114 = arith.constant 0 : index
    %c2_115 = arith.constant 2 : index
    %248 = vector.load %arg15[%c1_113, %c0_114, %c2_115] : memref<2x16x290xf32, #tpu.memory_space<vmem>>, vector<1x16x256xf32>
    %249 = vector.shape_cast %248 : vector<1x16x256xf32> to vector<16x256xf32>
    %250 = arith.mulf %249, %104 : vector<16x256xf32>
    %251 = arith.addf %247, %250 : vector<16x256xf32>
    %c1_116 = arith.constant 1 : index
    %c0_117 = arith.constant 0 : index
    %c16_118 = arith.constant 16 : index
    %252 = vector.load %arg15[%c1_116, %c0_117, %c16_118] : memref<2x16x290xf32, #tpu.memory_space<vmem>>, vector<1x16x256xf32>
    %253 = vector.shape_cast %252 : vector<1x16x256xf32> to vector<16x256xf32>
    %254 = arith.mulf %253, %119 : vector<16x256xf32>
    %255 = arith.addf %251, %254 : vector<16x256xf32>
    %c1_119 = arith.constant 1 : index
    %c0_120 = arith.constant 0 : index
    %c17_121 = arith.constant 17 : index
    %256 = vector.load %arg15[%c1_119, %c0_120, %c17_121] : memref<2x16x290xf32, #tpu.memory_space<vmem>>, vector<1x16x256xf32>
    %257 = vector.shape_cast %256 : vector<1x16x256xf32> to vector<16x256xf32>
    %258 = vector.broadcast %120 : vector<16x1xf32> to vector<16x256xf32>
    %259 = arith.mulf %257, %258 : vector<16x256xf32>
    %260 = arith.addf %255, %259 : vector<16x256xf32>
    %c1_122 = arith.constant 1 : index
    %c0_123 = arith.constant 0 : index
    %c18_124 = arith.constant 18 : index
    %261 = vector.load %arg15[%c1_122, %c0_123, %c18_124] : memref<2x16x290xf32, #tpu.memory_space<vmem>>, vector<1x16x256xf32>
    %262 = vector.shape_cast %261 : vector<1x16x256xf32> to vector<16x256xf32>
    %263 = arith.mulf %262, %135 : vector<16x256xf32>
    %264 = arith.addf %260, %263 : vector<16x256xf32>
    %c1_125 = arith.constant 1 : index
    %c0_126 = arith.constant 0 : index
    %c32_127 = arith.constant 32 : index
    %265 = vector.load %arg15[%c1_125, %c0_126, %c32_127] : memref<2x16x290xf32, #tpu.memory_space<vmem>>, vector<1x16x256xf32>
    %266 = vector.shape_cast %265 : vector<1x16x256xf32> to vector<16x256xf32>
    %267 = arith.mulf %266, %150 : vector<16x256xf32>
    %268 = arith.addf %264, %267 : vector<16x256xf32>
    %c1_128 = arith.constant 1 : index
    %c0_129 = arith.constant 0 : index
    %c33_130 = arith.constant 33 : index
    %269 = vector.load %arg15[%c1_128, %c0_129, %c33_130] : memref<2x16x290xf32, #tpu.memory_space<vmem>>, vector<1x16x256xf32>
    %270 = vector.shape_cast %269 : vector<1x16x256xf32> to vector<16x256xf32>
    %271 = vector.broadcast %151 : vector<16x1xf32> to vector<16x256xf32>
    %272 = arith.mulf %270, %271 : vector<16x256xf32>
    %273 = arith.addf %268, %272 : vector<16x256xf32>
    %c1_131 = arith.constant 1 : index
    %c0_132 = arith.constant 0 : index
    %c34_133 = arith.constant 34 : index
    %274 = vector.load %arg15[%c1_131, %c0_132, %c34_133] : memref<2x16x290xf32, #tpu.memory_space<vmem>>, vector<1x16x256xf32>
    %275 = vector.shape_cast %274 : vector<1x16x256xf32> to vector<16x256xf32>
    %276 = arith.mulf %275, %166 : vector<16x256xf32>
    %277 = arith.addf %273, %276 : vector<16x256xf32>
    %cst_134 = arith.constant dense<0.000000e+00> : vector<16xf32>
    %278 = vector.multi_reduction <add>, %277, %cst_134 [1] : vector<16x256xf32> to vector<16xf32>
    %279 = vector.shape_cast %278 : vector<16xf32> to vector<16x1xf32>
    %280 = arith.addf %221, %279 : vector<16x1xf32>
    %281 = arith.mulf %277, %277 : vector<16x256xf32>
    %cst_135 = arith.constant dense<0.000000e+00> : vector<16xf32>
    %282 = vector.multi_reduction <add>, %281, %cst_135 [1] : vector<16x256xf32> to vector<16xf32>
    %283 = vector.shape_cast %282 : vector<16xf32> to vector<16x1xf32>
    %284 = arith.addf %226, %283 : vector<16x1xf32>
    %cst_136 = arith.constant 5.120000e+02 : f32
    %285 = vector.broadcast %cst_136 : f32 to vector<16x1xf32>
    %286 = arith.divf %280, %285 : vector<16x1xf32>
    %cst_137 = arith.constant 5.120000e+02 : f32
    %287 = vector.broadcast %cst_137 : f32 to vector<16x1xf32>
    %288 = arith.divf %284, %287 : vector<16x1xf32>
    %289 = arith.mulf %286, %286 : vector<16x1xf32>
    %290 = arith.subf %288, %289 : vector<16x1xf32>
    %c0_138 = arith.constant 0 : index
    %c0_139 = arith.constant 0 : index
    %291 = vector.load %arg5[%c0_138, %c0_139] : memref<16x1xf32, #tpu.memory_space<vmem>>, vector<16x1xf32>
    %cst_140 = arith.constant 9.99999974E-6 : f32
    %292 = vector.broadcast %cst_140 : f32 to vector<16x1xf32>
    %293 = arith.addf %290, %292 : vector<16x1xf32>
    %294 = math.rsqrt %293 : vector<16x1xf32>
    %295 = arith.mulf %291, %294 : vector<16x1xf32>
    %c0_141 = arith.constant 0 : index
    %c0_142 = arith.constant 0 : index
    %296 = vector.load %arg6[%c0_141, %c0_142] : memref<16x1xf32, #tpu.memory_space<vmem>>, vector<16x1xf32>
    %297 = arith.mulf %286, %295 : vector<16x1xf32>
    %298 = arith.subf %296, %297 : vector<16x1xf32>
    %299 = vector.shape_cast %295 : vector<16x1xf32> to vector<16x1xf32>
    %300 = vector.broadcast %299 : vector<16x1xf32> to vector<16x256xf32>
    %301 = vector.shape_cast %298 : vector<16x1xf32> to vector<16x1xf32>
    %302 = vector.broadcast %301 : vector<16x1xf32> to vector<16x256xf32>
    %c0_143 = arith.constant 0 : index
    %c0_144 = arith.constant 0 : index
    %303 = vector.load %arg11[%c0_143, %c0_144] : memref<8x16xf32, #tpu.memory_space<vmem>>, vector<8x16xf32>
    %c0_145 = arith.constant 0 : index
    %c0_146 = arith.constant 0 : index
    %304 = vector.load %arg7[%c0_145, %c0_146] : memref<4x16xf32, #tpu.memory_space<vmem>>, vector<4x16xf32>
    %c0_147 = arith.constant 0 : index
    %c0_148 = arith.constant 0 : index
    %305 = vector.load %arg8[%c0_147, %c0_148] : memref<4x1xf32, #tpu.memory_space<vmem>>, vector<4x1xf32>
    %c0_149 = arith.constant 0 : index
    %c0_150 = arith.constant 0 : index
    %306 = vector.load %arg9[%c0_149, %c0_150] : memref<16x4xf32, #tpu.memory_space<vmem>>, vector<16x4xf32>
    %c0_151 = arith.constant 0 : index
    %c0_152 = arith.constant 0 : index
    %307 = vector.load %arg10[%c0_151, %c0_152] : memref<16x1xf32, #tpu.memory_space<vmem>>, vector<16x1xf32>
    %308 = arith.mulf %217, %300 : vector<16x256xf32>
    %309 = arith.addf %308, %302 : vector<16x256xf32>
    %310 = arith.negf %309 : vector<16x256xf32>
    %311 = math.exp %310 : vector<16x256xf32>
    %cst_153 = arith.constant 1.000000e+00 : f32
    %312 = vector.broadcast %cst_153 : f32 to vector<16x256xf32>
    %313 = arith.addf %312, %311 : vector<16x256xf32>
    %314 = arith.divf %312, %313 : vector<16x256xf32>
    %315 = arith.mulf %309, %314 : vector<16x256xf32>
    %cst_154 = arith.constant dense<0.000000e+00> : vector<16xf32>
    %316 = vector.multi_reduction <add>, %315, %cst_154 [1] : vector<16x256xf32> to vector<16xf32>
    %317 = vector.shape_cast %316 : vector<16xf32> to vector<16x1xf32>
    %cst_155 = arith.constant 3.906250e-03 : f32
    %318 = vector.broadcast %cst_155 : f32 to vector<16x1xf32>
    %319 = arith.mulf %317, %318 : vector<16x1xf32>
    %cst_156 = arith.constant dense<0.000000e+00> : vector<4x1xf32>
    %320 = tpu.matmul %304, %319, %cst_156 {dimension_numbers = #tpu.dot_dimension_numbers<[1], [0], [0], [1], [0, 0, 1, 1], [], []>} : vector<4x16xf32>, vector<16x1xf32>, vector<4x1xf32> -> vector<4x1xf32>
    %321 = arith.addf %320, %305 : vector<4x1xf32>
    %322 = arith.negf %321 : vector<4x1xf32>
    %323 = math.exp %322 : vector<4x1xf32>
    %cst_157 = arith.constant 1.000000e+00 : f32
    %324 = vector.broadcast %cst_157 : f32 to vector<4x1xf32>
    %325 = arith.addf %324, %323 : vector<4x1xf32>
    %326 = arith.divf %324, %325 : vector<4x1xf32>
    %327 = arith.mulf %321, %326 : vector<4x1xf32>
    %cst_158 = arith.constant dense<0.000000e+00> : vector<16x1xf32>
    %328 = tpu.matmul %306, %327, %cst_158 {dimension_numbers = #tpu.dot_dimension_numbers<[1], [0], [0], [1], [0, 0, 1, 1], [], []>} : vector<16x4xf32>, vector<4x1xf32>, vector<16x1xf32> -> vector<16x1xf32>
    %329 = arith.addf %328, %307 : vector<16x1xf32>
    %330 = arith.negf %329 : vector<16x1xf32>
    %331 = math.exp %330 : vector<16x1xf32>
    %cst_159 = arith.constant 1.000000e+00 : f32
    %332 = vector.broadcast %cst_159 : f32 to vector<16x1xf32>
    %333 = arith.addf %332, %331 : vector<16x1xf32>
    %334 = arith.divf %332, %333 : vector<16x1xf32>
    %335 = vector.broadcast %334 : vector<16x1xf32> to vector<16x256xf32>
    %336 = arith.mulf %315, %335 : vector<16x256xf32>
    %cst_160 = arith.constant dense<0.000000e+00> : vector<8x256xf32>
    %337 = tpu.matmul %303, %336, %cst_160 {dimension_numbers = #tpu.dot_dimension_numbers<[1], [0], [0], [1], [0, 0, 1, 1], [], []>} : vector<8x16xf32>, vector<16x256xf32>, vector<8x256xf32> -> vector<8x256xf32>
    %cst_161 = arith.constant dense<0.000000e+00> : vector<8xf32>
    %338 = vector.multi_reduction <add>, %337, %cst_161 [1] : vector<8x256xf32> to vector<8xf32>
    %339 = vector.shape_cast %338 : vector<8xf32> to vector<8x1xf32>
    %cst_162 = arith.constant 0.000000e+00 : f32
    %340 = vector.broadcast %cst_162 : f32 to vector<8x1xf32>
    %341 = arith.addf %340, %339 : vector<8x1xf32>
    %342 = arith.mulf %337, %337 : vector<8x256xf32>
    %cst_163 = arith.constant dense<0.000000e+00> : vector<8xf32>
    %343 = vector.multi_reduction <add>, %342, %cst_163 [1] : vector<8x256xf32> to vector<8xf32>
    %344 = vector.shape_cast %343 : vector<8xf32> to vector<8x1xf32>
    %cst_164 = arith.constant 0.000000e+00 : f32
    %345 = vector.broadcast %cst_164 : f32 to vector<8x1xf32>
    %346 = arith.addf %345, %344 : vector<8x1xf32>
    %347 = arith.mulf %277, %300 : vector<16x256xf32>
    %348 = arith.addf %347, %302 : vector<16x256xf32>
    %349 = arith.negf %348 : vector<16x256xf32>
    %350 = math.exp %349 : vector<16x256xf32>
    %cst_165 = arith.constant 1.000000e+00 : f32
    %351 = vector.broadcast %cst_165 : f32 to vector<16x256xf32>
    %352 = arith.addf %351, %350 : vector<16x256xf32>
    %353 = arith.divf %351, %352 : vector<16x256xf32>
    %354 = arith.mulf %348, %353 : vector<16x256xf32>
    %cst_166 = arith.constant dense<0.000000e+00> : vector<16xf32>
    %355 = vector.multi_reduction <add>, %354, %cst_166 [1] : vector<16x256xf32> to vector<16xf32>
    %356 = vector.shape_cast %355 : vector<16xf32> to vector<16x1xf32>
    %cst_167 = arith.constant 3.906250e-03 : f32
    %357 = vector.broadcast %cst_167 : f32 to vector<16x1xf32>
    %358 = arith.mulf %356, %357 : vector<16x1xf32>
    %cst_168 = arith.constant dense<0.000000e+00> : vector<4x1xf32>
    %359 = tpu.matmul %304, %358, %cst_168 {dimension_numbers = #tpu.dot_dimension_numbers<[1], [0], [0], [1], [0, 0, 1, 1], [], []>} : vector<4x16xf32>, vector<16x1xf32>, vector<4x1xf32> -> vector<4x1xf32>
    %360 = arith.addf %359, %305 : vector<4x1xf32>
    %361 = arith.negf %360 : vector<4x1xf32>
    %362 = math.exp %361 : vector<4x1xf32>
    %cst_169 = arith.constant 1.000000e+00 : f32
    %363 = vector.broadcast %cst_169 : f32 to vector<4x1xf32>
    %364 = arith.addf %363, %362 : vector<4x1xf32>
    %365 = arith.divf %363, %364 : vector<4x1xf32>
    %366 = arith.mulf %360, %365 : vector<4x1xf32>
    %cst_170 = arith.constant dense<0.000000e+00> : vector<16x1xf32>
    %367 = tpu.matmul %306, %366, %cst_170 {dimension_numbers = #tpu.dot_dimension_numbers<[1], [0], [0], [1], [0, 0, 1, 1], [], []>} : vector<16x4xf32>, vector<4x1xf32>, vector<16x1xf32> -> vector<16x1xf32>
    %368 = arith.addf %367, %307 : vector<16x1xf32>
    %369 = arith.negf %368 : vector<16x1xf32>
    %370 = math.exp %369 : vector<16x1xf32>
    %cst_171 = arith.constant 1.000000e+00 : f32
    %371 = vector.broadcast %cst_171 : f32 to vector<16x1xf32>
    %372 = arith.addf %371, %370 : vector<16x1xf32>
    %373 = arith.divf %371, %372 : vector<16x1xf32>
    %374 = vector.broadcast %373 : vector<16x1xf32> to vector<16x256xf32>
    %375 = arith.mulf %354, %374 : vector<16x256xf32>
    %cst_172 = arith.constant dense<0.000000e+00> : vector<8x256xf32>
    %376 = tpu.matmul %303, %375, %cst_172 {dimension_numbers = #tpu.dot_dimension_numbers<[1], [0], [0], [1], [0, 0, 1, 1], [], []>} : vector<8x16xf32>, vector<16x256xf32>, vector<8x256xf32> -> vector<8x256xf32>
    %cst_173 = arith.constant dense<0.000000e+00> : vector<8xf32>
    %377 = vector.multi_reduction <add>, %376, %cst_173 [1] : vector<8x256xf32> to vector<8xf32>
    %378 = vector.shape_cast %377 : vector<8xf32> to vector<8x1xf32>
    %379 = arith.addf %341, %378 : vector<8x1xf32>
    %380 = arith.mulf %376, %376 : vector<8x256xf32>
    %cst_174 = arith.constant dense<0.000000e+00> : vector<8xf32>
    %381 = vector.multi_reduction <add>, %380, %cst_174 [1] : vector<8x256xf32> to vector<8xf32>
    %382 = vector.shape_cast %381 : vector<8xf32> to vector<8x1xf32>
    %383 = arith.addf %346, %382 : vector<8x1xf32>
    %cst_175 = arith.constant 5.120000e+02 : f32
    %384 = vector.broadcast %cst_175 : f32 to vector<8x1xf32>
    %385 = arith.divf %379, %384 : vector<8x1xf32>
    %cst_176 = arith.constant 5.120000e+02 : f32
    %386 = vector.broadcast %cst_176 : f32 to vector<8x1xf32>
    %387 = arith.divf %383, %386 : vector<8x1xf32>
    %388 = arith.mulf %385, %385 : vector<8x1xf32>
    %389 = arith.subf %387, %388 : vector<8x1xf32>
    %c0_177 = arith.constant 0 : index
    %c0_178 = arith.constant 0 : index
    %390 = vector.load %arg12[%c0_177, %c0_178] : memref<8x1xf32, #tpu.memory_space<vmem>>, vector<8x1xf32>
    %cst_179 = arith.constant 9.99999974E-6 : f32
    %391 = vector.broadcast %cst_179 : f32 to vector<8x1xf32>
    %392 = arith.addf %389, %391 : vector<8x1xf32>
    %393 = math.rsqrt %392 : vector<8x1xf32>
    %394 = arith.mulf %390, %393 : vector<8x1xf32>
    %c0_180 = arith.constant 0 : index
    %c0_181 = arith.constant 0 : index
    %395 = vector.load %arg13[%c0_180, %c0_181] : memref<8x1xf32, #tpu.memory_space<vmem>>, vector<8x1xf32>
    %396 = arith.mulf %385, %394 : vector<8x1xf32>
    %397 = arith.subf %395, %396 : vector<8x1xf32>
    %398 = vector.shape_cast %394 : vector<8x1xf32> to vector<8x1xf32>
    %399 = vector.broadcast %398 : vector<8x1xf32> to vector<8x256xf32>
    %400 = vector.shape_cast %397 : vector<8x1xf32> to vector<8x1xf32>
    %401 = vector.broadcast %400 : vector<8x1xf32> to vector<8x256xf32>
    %402 = arith.mulf %337, %399 : vector<8x256xf32>
    %403 = arith.addf %402, %401 : vector<8x256xf32>
    %c0_182 = arith.constant 0 : index
    %c0_183 = arith.constant 0 : index
    %c0_184 = arith.constant 0 : index
    %404 = vector.load %arg0[%c0_182, %c0_183, %c0_184] : memref<2x8x256xf32, #tpu.memory_space<vmem>>, vector<1x8x256xf32>
    %405 = vector.shape_cast %404 : vector<1x8x256xf32> to vector<8x256xf32>
    %406 = arith.addf %403, %405 : vector<8x256xf32>
    %c0_185 = arith.constant 0 : index
    %c0_186 = arith.constant 0 : index
    %c0_187 = arith.constant 0 : index
    %407 = vector.load %arg14[%c0_185, %c0_186, %c0_187] : memref<2x8x256xf32, #tpu.memory_space<vmem>>, vector<1x8x256xf32>
    %408 = vector.shape_cast %407 : vector<1x8x256xf32> to vector<8x256xf32>
    %409 = vector.shape_cast %406 : vector<8x256xf32> to vector<1x8x256xf32>
    tpu.vector_store %arg14[%c0_185, %c0_186, %c0_187], %409 {strides = array<i32>} : memref<2x8x256xf32, #tpu.memory_space<vmem>>, vector<1x8x256xf32>,
    %410 = arith.mulf %376, %399 : vector<8x256xf32>
    %411 = arith.addf %410, %401 : vector<8x256xf32>
    %c1_188 = arith.constant 1 : index
    %c0_189 = arith.constant 0 : index
    %c0_190 = arith.constant 0 : index
    %412 = vector.load %arg0[%c1_188, %c0_189, %c0_190] : memref<2x8x256xf32, #tpu.memory_space<vmem>>, vector<1x8x256xf32>
    %413 = vector.shape_cast %412 : vector<1x8x256xf32> to vector<8x256xf32>
    %414 = arith.addf %411, %413 : vector<8x256xf32>
    %c1_191 = arith.constant 1 : index
    %c0_192 = arith.constant 0 : index
    %c0_193 = arith.constant 0 : index
    %415 = vector.load %arg14[%c1_191, %c0_192, %c0_193] : memref<2x8x256xf32, #tpu.memory_space<vmem>>, vector<1x8x256xf32>
    %416 = vector.shape_cast %415 : vector<1x8x256xf32> to vector<8x256xf32>
    %417 = vector.shape_cast %414 : vector<8x256xf32> to vector<1x8x256xf32>
    tpu.vector_store %arg14[%c1_191, %c0_192, %c0_193], %417 {strides = array<i32>} : memref<2x8x256xf32, #tpu.memory_space<vmem>>, vector<1x8x256xf32>,
    return
  }
}

</mosaic_0001>

<llo_original>
// kernel: tpu_custom_call.1
$region0: #{tpu_custom_call.1}
  #allocation0 [shape = 'u32[]', space=smem, size = 0x4, offset = 0x4, fixed_abs, tag = 'smem constant byte address 0x4 - core index']
  #allocation1 [shape = 'u32[72,128]{1,0:T(1,128)}', space=vmem, size = 0x9000, scoped, tag = 'internal scratch']
  #allocation2 [shape = 'f32[2,16,290]{2,1,0:T(8,128)}', space=vmem, size = 0xc000, scoped, tag = 'scratch operand']
  %s0 = inlined_call_operand.vmem [shape: f32[2,8,256], index: 0, kind: input, shape index: {}]
  %s1 = inlined_call_operand.vmem [shape: f32[16,8], index: 1, kind: input, shape index: {}]
  %s2 = inlined_call_operand.vmem [shape: f32[16,1], index: 2, kind: input, shape index: {}]
  %s3 = inlined_call_operand.vmem [shape: f32[16,1], index: 3, kind: input, shape index: {}]
  %s4 = inlined_call_operand.vmem [shape: f32[16,9], index: 4, kind: input, shape index: {}]
  %s5 = inlined_call_operand.vmem [shape: f32[16,1], index: 5, kind: input, shape index: {}]
  %s6 = inlined_call_operand.vmem [shape: f32[16,1], index: 6, kind: input, shape index: {}]
  %s7 = inlined_call_operand.vmem [shape: f32[4,16], index: 7, kind: input, shape index: {}]
  %s8 = inlined_call_operand.vmem [shape: f32[4,1], index: 8, kind: input, shape index: {}]
  %s9 = inlined_call_operand.vmem [shape: f32[16,4], index: 9, kind: input, shape index: {}]
  %s10 = inlined_call_operand.vmem [shape: f32[16,1], index: 10, kind: input, shape index: {}]
  %s11 = inlined_call_operand.vmem [shape: f32[8,16], index: 11, kind: input, shape index: {}]
  %s12 = inlined_call_operand.vmem [shape: f32[8,1], index: 12, kind: input, shape index: {}]
  %s13 = inlined_call_operand.vmem [shape: f32[8,1], index: 13, kind: input, shape index: {}]
  %s14 = inlined_call_operand.hbm [shape: f32[2,8,256], index: 14, kind: output, shape index: {}]
  %s15 = sld [smem:[#allocation0]]
  $region66: #{tpu_custom_call.1} parent=0
    _
  %s17 = ssub.s32 1, %s15
  %s18 = scalar_select 0, %s17, %s15
  $region1: #{tpu_custom_call.1} parent=0
    #allocation3 [shape = 'u8[16384]{0}', space=vmem, size = 0x4000, scoped, tag = 'output window, operand 0, single buffered']
    #allocation4 [shape = 's32[1]{0}', space=sflag, size = 0x4, scoped, tag = 'scoped memory for tpu_custom_call.1']
    %19 = vsyncpa [#allocation4], 0
    // Predicated region
    $region2: #{tpu_custom_call.1} parent=1 // pred_check
      _
    $region3: #{tpu_custom_call.1} parent=1 // pred_check_branch
      %21 = sbr.rel (0) target = $region5
    $region4: #{tpu_custom_call.1} parent=1 // pred_region
      _
    $region5: #{tpu_custom_call.1} parent=1 // pred_fallthru
      _
    // Predicated region
    $region6: #{tpu_custom_call.1} parent=1 // pred_check
      _
    $region7: #{tpu_custom_call.1} parent=1 // pred_check_branch
      %23 = sbr.rel (0) target = $region9
    $region8: #{tpu_custom_call.1} parent=1 // pred_region
      _
    $region9: #{tpu_custom_call.1} parent=1 // pred_fallthru
      _
    // Predicated region
    $region10: #{tpu_custom_call.1} parent=1 // pred_check
      _
    $region11: #{tpu_custom_call.1} parent=1 // pred_check_branch
      %25 = sbr.rel (0) target = $region13
    $region12: #{tpu_custom_call.1} parent=1 // pred_region
      _
    $region13: #{tpu_custom_call.1} parent=1 // pred_fallthru
      _
    // Predicated region
    $region14: #{tpu_custom_call.1} parent=1 // pred_check
      _
    $region15: #{tpu_custom_call.1} parent=1 // pred_check_branch
      %27 = sbr.rel (0) target = $region17
    $region16: #{tpu_custom_call.1} parent=1 // pred_region
      _
    $region17: #{tpu_custom_call.1} parent=1 // pred_fallthru
      _
    // Predicated region
    $region18: #{tpu_custom_call.1} parent=1 // pred_check
      _
    $region19: #{tpu_custom_call.1} parent=1 // pred_check_branch
      %29 = sbr.rel (0) target = $region21
    $region20: #{tpu_custom_call.1} parent=1 // pred_region
      _
    $region21: #{tpu_custom_call.1} parent=1 // pred_fallthru
      _
    // Predicated region
    $region22: #{tpu_custom_call.1} parent=1 // pred_check
      _
    $region23: #{tpu_custom_call.1} parent=1 // pred_check_branch
      %31 = sbr.rel (0) target = $region25
    $region24: #{tpu_custom_call.1} parent=1 // pred_region
      _
    $region25: #{tpu_custom_call.1} parent=1 // pred_fallthru
      _
    // Predicated region
    $region26: #{tpu_custom_call.1} parent=1 // pred_check
      _
    $region27: #{tpu_custom_call.1} parent=1 // pred_check_branch
      %33 = sbr.rel (0) target = $region29
    $region28: #{tpu_custom_call.1} parent=1 // pred_region
      _
    $region29: #{tpu_custom_call.1} parent=1 // pred_fallthru
      _
    // Predicated region
    $region30: #{tpu_custom_call.1} parent=1 // pred_check
      _
    $region31: #{tpu_custom_call.1} parent=1 // pred_check_branch
      %35 = sbr.rel (0) target = $region33
    $region32: #{tpu_custom_call.1} parent=1 // pred_region
      _
    $region33: #{tpu_custom_call.1} parent=1 // pred_fallthru
      _
    // Predicated region
    $region34: #{tpu_custom_call.1} parent=1 // pred_check
      _
    $region35: #{tpu_custom_call.1} parent=1 // pred_check_branch
      %37 = sbr.rel (0) target = $region37
    $region36: #{tpu_custom_call.1} parent=1 // pred_region
      _
    $region37: #{tpu_custom_call.1} parent=1 // pred_fallthru
      _
    // Predicated region
    $region38: #{tpu_custom_call.1} parent=1 // pred_check
      _
    $region39: #{tpu_custom_call.1} parent=1 // pred_check_branch
      %39 = sbr.rel (0) target = $region41
    $region40: #{tpu_custom_call.1} parent=1 // pred_region
      _
    $region41: #{tpu_custom_call.1} parent=1 // pred_fallthru
      _
    // Predicated region
    $region42: #{tpu_custom_call.1} parent=1 // pred_check
      _
    $region43: #{tpu_custom_call.1} parent=1 // pred_check_branch
      %41 = sbr.rel (0) target = $region45
    $region44: #{tpu_custom_call.1} parent=1 // pred_region
      _
    $region45: #{tpu_custom_call.1} parent=1 // pred_fallthru
      _
    // Predicated region
    $region46: #{tpu_custom_call.1} parent=1 // pred_check
      _
    $region47: #{tpu_custom_call.1} parent=1 // pred_check_branch
      %43 = sbr.rel (0) target = $region49
    $region48: #{tpu_custom_call.1} parent=1 // pred_region
      _
    $region49: #{tpu_custom_call.1} parent=1 // pred_fallthru
      _
    // Predicated region
    $region50: #{tpu_custom_call.1} parent=1 // pred_check
      _
    $region51: #{tpu_custom_call.1} parent=1 // pred_check_branch
      %45 = sbr.rel (0) target = $region53
    $region52: #{tpu_custom_call.1} parent=1 // pred_region
      _
    $region53: #{tpu_custom_call.1} parent=1 // pred_fallthru
      _
    // Predicated region
    $region54: #{tpu_custom_call.1} parent=1 // pred_check
      _
    $region55: #{tpu_custom_call.1} parent=1 // pred_check_branch
      %47 = sbr.rel (0) target = $region57
    $region56: #{tpu_custom_call.1} parent=1 // pred_region
      _
    $region57: #{tpu_custom_call.1} parent=1 // pred_fallthru
      _
    %v48 = vld [vmem:[%s1] sm:$0xff]
    %v49 = vld [vmem:[%s1 + $0x8] sm:$0xff]
    %v50 = vld [vmem:[%s0] sm:$0xff]
    %v51 = vld [vmem:[%s0 + $0x8] sm:$0xff]
    %vm52 = vcmask 64512
    %v54 = vsel %vm52, %v48, 0
    %v57 = vsel %vm52, %v49, 0
    %59 = vmatpush.msra.mxu0 0.0
    %60 = vmatpush.msra.mxu0 0.0
    %61 = vmatpush.msra.mxu0 0.0
    %62 = vmatpush.msra.mxu0 0.0
    %63 = vmatpush.msra.mxu0 0.0
    %64 = vmatpush.msra.mxu0 0.0
    %65 = vmatpush.msra.mxu0 0.0
    %66 = vmatpush.msra.mxu0 0.0
    %67 = vmatpush.msra.mxu0 0.0
    %68 = vmatpush.msra.mxu0 0.0
    %69 = vmatpush.msra.mxu0 0.0
    %70 = vmatpush.msra.mxu0 0.0
    %71 = vmatpush.msra.mxu0 0.0
    %72 = vmatpush.msra.mxu0 0.0
    %73 = vmatpush.msra.mxu0 0.0
    %74 = vmatpush.msra.mxu0 %v50
    %75 = vmatmul.f32.gmra.mxu0 %v54
    %v76 = vpop.f32.mrf.mxu0
    %v77 = vadd.f32 0.0, %v76
    %78 = vmatmul.f32.gmra.mxu0 %v57
    %v79 = vpop.f32.mrf.mxu0
    %v80 = vadd.f32 0.0, %v79
    %81 = vdwg.mxu0
    %82 = vmatpush.msra.mxu0 0.0
    %83 = vmatpush.msra.mxu0 0.0
    %84 = vmatpush.msra.mxu0 0.0
    %85 = vmatpush.msra.mxu0 0.0
    %86 = vmatpush.msra.mxu0 0.0
    %87 = vmatpush.msra.mxu0 0.0
    %88 = vmatpush.msra.mxu0 0.0
    %89 = vmatpush.msra.mxu0 0.0
    %90 = vmatpush.msra.mxu0 0.0
    %91 = vmatpush.msra.mxu0 0.0
    %92 = vmatpush.msra.mxu0 0.0
    %93 = vmatpush.msra.mxu0 0.0
    %94 = vmatpush.msra.mxu0 0.0
    %95 = vmatpush.msra.mxu0 0.0
    %96 = vmatpush.msra.mxu0 0.0
    %97 = vmatpush.msra.mxu0 %v51
    %98 = vmatmul.f32.gmra.mxu0 %v54
    %v99 = vpop.f32.mrf.mxu0
    %v100 = vadd.f32 0.0, %v99
    %101 = vmatmul.f32.gmra.mxu0 %v57
    %v102 = vpop.f32.mrf.mxu0
    %v103 = vadd.f32 0.0, %v102
    %104 = vdwg.mxu0
    %v105 = vadd.f32 %v77, %v100
    %106 = vadd.xlane.f32.xlu0 %v105
    %v107 = vpop.xlane.xlu0 %106
    %v108 = vadd.f32 %v80, %v103
    %109 = vadd.xlane.f32.xlu0 %v108
    %v110 = vpop.xlane.xlu0 %109
    %v111 = vadd.f32 %v107, 0.0
    %v112 = vadd.f32 %v110, 0.0
    %v113 = vmul.f32 %v77, %v77
    %v114 = vmul.f32 %v100, %v100
    %v115 = vmul.f32 %v80, %v80
    %v116 = vmul.f32 %v103, %v103
    %v117 = vadd.f32 %v113, %v114
    %118 = vadd.xlane.f32.xlu0 %v117
    %v119 = vpop.xlane.xlu0 %118
    %v120 = vadd.f32 %v115, %v116
    %121 = vadd.xlane.f32.xlu0 %v120
    %v122 = vpop.xlane.xlu0 %121
    %v123 = vadd.f32 %v119, 0.0
    %v124 = vadd.f32 %v122, 0.0
    %s125 = scalar_lea.vmem %s0, 16
    %v126 = vld [vmem:[%s125] sm:$0xff]
    %v127 = vld [vmem:[%s125 + $0x8] sm:$0xff]
    %128 = vmatpush.msra.mxu0 0.0
    %129 = vmatpush.msra.mxu0 0.0
    %130 = vmatpush.msra.mxu0 0.0
    %131 = vmatpush.msra.mxu0 0.0
    %132 = vmatpush.msra.mxu0 0.0
    %133 = vmatpush.msra.mxu0 0.0
    %134 = vmatpush.msra.mxu0 0.0
    %135 = vmatpush.msra.mxu0 0.0
    %136 = vmatpush.msra.mxu0 0.0
    %137 = vmatpush.msra.mxu0 0.0
    %138 = vmatpush.msra.mxu0 0.0
    %139 = vmatpush.msra.mxu0 0.0
    %140 = vmatpush.msra.mxu0 0.0
    %141 = vmatpush.msra.mxu0 0.0
    %142 = vmatpush.msra.mxu0 0.0
    %143 = vmatpush.msra.mxu0 %v126
    %144 = vmatmul.f32.gmra.mxu0 %v54
    %v145 = vpop.f32.mrf.mxu0
    %v146 = vadd.f32 0.0, %v145
    %147 = vmatmul.f32.gmra.mxu0 %v57
    %v148 = vpop.f32.mrf.mxu0
    %v149 = vadd.f32 0.0, %v148
    %150 = vdwg.mxu0
    %151 = vmatpush.msra.mxu0 0.0
    %152 = vmatpush.msra.mxu0 0.0
    %153 = vmatpush.msra.mxu0 0.0
    %154 = vmatpush.msra.mxu0 0.0
    %155 = vmatpush.msra.mxu0 0.0
    %156 = vmatpush.msra.mxu0 0.0
    %157 = vmatpush.msra.mxu0 0.0
    %158 = vmatpush.msra.mxu0 0.0
    %159 = vmatpush.msra.mxu0 0.0
    %160 = vmatpush.msra.mxu0 0.0
    %161 = vmatpush.msra.mxu0 0.0
    %162 = vmatpush.msra.mxu0 0.0
    %163 = vmatpush.msra.mxu0 0.0
    %164 = vmatpush.msra.mxu0 0.0
    %165 = vmatpush.msra.mxu0 0.0
    %166 = vmatpush.msra.mxu0 %v127
    %167 = vmatmul.f32.gmra.mxu0 %v54
    %v168 = vpop.f32.mrf.mxu0
    %v169 = vadd.f32 0.0, %v168
    %170 = vmatmul.f32.gmra.mxu0 %v57
    %v171 = vpop.f32.mrf.mxu0
    %v172 = vadd.f32 0.0, %v171
    %173 = vdwg.mxu0
    %v174 = vadd.f32 %v146, %v169
    %175 = vadd.xlane.f32.xlu0 %v174
    %v176 = vpop.xlane.xlu0 %175
    %v177 = vadd.f32 %v149, %v172
    %178 = vadd.xlane.f32.xlu0 %v177
    %v179 = vpop.xlane.xlu0 %178
    %v180 = vadd.f32 %v111, %v176
    %v181 = vadd.f32 %v112, %v179
    %v182 = vmul.f32 %v146, %v146
    %v183 = vmul.f32 %v169, %v169
    %v184 = vmul.f32 %v149, %v149
    %v185 = vmul.f32 %v172, %v172
    %v186 = vadd.f32 %v182, %v183
    %187 = vadd.xlane.f32.xlu0 %v186
    %v188 = vpop.xlane.xlu0 %187
    %v189 = vadd.f32 %v184, %v185
    %190 = vadd.xlane.f32.xlu0 %v189
    %v191 = vpop.xlane.xlu0 %190
    %v192 = vadd.f32 %v123, %v188
    %v193 = vadd.f32 %v124, %v191
    %v194 = vrcp.pop 512.0
    %v195 = vmul.f32 512.0, %v194
    %v196 = vsub.f32 1.0, %v195
    %v197 = vmul.f32 %v194, %v196
    %v198 = vadd.f32 %v194, %v197
    %vm199 = vweird.f32 %v194
    %v200 = vsel %vm199, %v194, %v198
    %v201 = vmul.f32 %v180, %v200
    %v202 = vmul.f32 %v181, %v200
    %v203 = vmul.f32 %v192, %v200
    %v204 = vmul.f32 %v193, %v200
    %v205 = vmul.f32 %v201, %v201
    %v206 = vmul.f32 %v202, %v202
    %v207 = vsub.f32 %v203, %v205
    %v208 = vsub.f32 %v204, %v206
    %v209 = vld [vmem:[%s2] sm:$0xff]
    %v210 = vld [vmem:[%s2 + $0x8] sm:$0xff]
    %v211 = vadd.f32 %v207, 1e-05
    %v212 = vadd.f32 %v208, 1e-05
    %v213 = vrsqrt.pop %v211
    %v214 = vmul.f32 %v213, %v211
    %v215 = vmul.f32 %v214, %v213
    %v216 = vmul.f32 0.5, %v215
    %v217 = vsub.f32 1.5, %v216
    %v218 = vmul.f32 %v213, %v217
    %vm219 = vweird.f32 %v211
    %vm220 = vweird.f32 %v213
    %vm221 = vmor %vm219, %vm220
    %v222 = vsel %vm221, %v213, %v218
    %v223 = vrsqrt.pop %v212
    %v224 = vmul.f32 %v223, %v212
    %v225 = vmul.f32 %v224, %v223
    %v226 = vmul.f32 0.5, %v225
    %v227 = vsub.f32 1.5, %v226
    %v228 = vmul.f32 %v223, %v227
    %vm229 = vweird.f32 %v212
    %vm230 = vweird.f32 %v223
    %vm231 = vmor %vm229, %vm230
    %v232 = vsel %vm231, %v223, %v228
    %v233 = vmul.f32 %v209, %v222
    %v234 = vmul.f32 %v210, %v232
    %v235 = vld [vmem:[%s3] sm:$0xff]
    %v236 = vld [vmem:[%s3 + $0x8] sm:$0xff]
    %v237 = vmul.f32 %v201, %v233
    %v238 = vmul.f32 %v202, %v234
    %v239 = vsub.f32 %v235, %v237
    %v240 = vsub.f32 %v236, %v238
    %242 = vset.pattern.permute.xlu0 0
    %243 = vperm.xlu0 %242, %v233
    %v244 = vpop.permute.xlu0 %243
    %247 = vset.pattern.permute.xlu0 0
    %248 = vperm.xlu0 %247, %v234
    %v249 = vpop.permute.xlu0 %248
    %252 = vset.pattern.permute.xlu0 0
    %253 = vperm.xlu0 %252, %v239
    %v254 = vpop.permute.xlu0 %253
    %257 = vset.pattern.permute.xlu0 0
    %258 = vperm.xlu0 %257, %v240
    %v259 = vpop.permute.xlu0 %258
    %v261 = vmul.f32 %v77, %v244
    %v262 = vmul.f32 %v100, %v244
    %v263 = vmul.f32 %v80, %v249
    %v264 = vmul.f32 %v103, %v249
    %v265 = vadd.f32 %v261, %v254
    %v266 = vadd.f32 %v262, %v254
    %v267 = vadd.f32 %v263, %v259
    %v268 = vadd.f32 %v264, %v259
    %v269 = vxor.u32 %v265, 2147483648
    %v270 = vxor.u32 %v266, 2147483648
    %v271 = vxor.u32 %v267, 2147483648
    %v272 = vxor.u32 %v268, 2147483648
    %v273 = vmul.f32 %v269, 1.442695
    %v274 = vpow.pop %v273
    %v275 = vmul.f32 %v270, 1.442695
    %v276 = vpow.pop %v275
    %v277 = vmul.f32 %v271, 1.442695
    %v278 = vpow.pop %v277
    %v279 = vmul.f32 %v272, 1.442695
    %v280 = vpow.pop %v279
    %v281 = vadd.f32 %v274, 1.0
    %v282 = vadd.f32 %v276, 1.0
    %v283 = vadd.f32 %v278, 1.0
    %v284 = vadd.f32 %v280, 1.0
    %v285 = vrcp.pop %v281
    %v286 = vmul.f32 %v281, %v285
    %v287 = vsub.f32 1.0, %v286
    %v288 = vmul.f32 %v285, %v287
    %v289 = vadd.f32 %v285, %v288
    %vm290 = vweird.f32 %v281
    %vm291 = vweird.f32 %v285
    %vm292 = vmor %vm290, %vm291
    %v293 = vsel %vm292, %v285, %v289
    %v294 = vand.u32 2147483647, %v281
    %vm295 = vcmp.eq.f32.partialorder %v294, 8.507059e+37
    %v296 = vand.u32 %v281, 2147483648
    %v297 = vor.u32 1.1754944e-38, %v296
    %v298 = vsel %vm295, %v297, %v293
    %v299 = vmul.f32 1.0, %v298
    %v300 = vrcp.pop %v282
    %v301 = vmul.f32 %v282, %v300
    %v302 = vsub.f32 1.0, %v301
    %v303 = vmul.f32 %v300, %v302
    %v304 = vadd.f32 %v300, %v303
    %vm305 = vweird.f32 %v282
    %vm306 = vweird.f32 %v300
    %vm307 = vmor %vm305, %vm306
    %v308 = vsel %vm307, %v300, %v304
    %v309 = vand.u32 2147483647, %v282
    %vm310 = vcmp.eq.f32.partialorder %v309, 8.507059e+37
    %v311 = vand.u32 %v282, 2147483648
    %v312 = vor.u32 1.1754944e-38, %v311
    %v313 = vsel %vm310, %v312, %v308
    %v314 = vmul.f32 1.0, %v313
    %v315 = vrcp.pop %v283
    %v316 = vmul.f32 %v283, %v315
    %v317 = vsub.f32 1.0, %v316
    %v318 = vmul.f32 %v315, %v317
    %v319 = vadd.f32 %v315, %v318
    %vm320 = vweird.f32 %v283
    %vm321 = vweird.f32 %v315
    %vm322 = vmor %vm320, %vm321
    %v323 = vsel %vm322, %v315, %v319
    %v324 = vand.u32 2147483647, %v283
    %vm325 = vcmp.eq.f32.partialorder %v324, 8.507059e+37
    %v326 = vand.u32 %v283, 2147483648
    %v327 = vor.u32 1.1754944e-38, %v326
    %v328 = vsel %vm325, %v327, %v323
    %v329 = vmul.f32 1.0, %v328
    %v330 = vrcp.pop %v284
    %v331 = vmul.f32 %v284, %v330
    %v332 = vsub.f32 1.0, %v331
    %v333 = vmul.f32 %v330, %v332
    %v334 = vadd.f32 %v330, %v333
    %vm335 = vweird.f32 %v284
    %vm336 = vweird.f32 %v330
    %vm337 = vmor %vm335, %vm336
    %v338 = vsel %vm337, %v330, %v334
    %v339 = vand.u32 2147483647, %v284
    %vm340 = vcmp.eq.f32.partialorder %v339, 8.507059e+37
    %v341 = vand.u32 %v284, 2147483648
    %v342 = vor.u32 1.1754944e-38, %v341
    %v343 = vsel %vm340, %v342, %v338
    %v344 = vmul.f32 1.0, %v343
    %v345 = vmul.f32 %v265, %v299
    %v346 = vmul.f32 %v266, %v314
    %v347 = vmul.f32 %v267, %v329
    %v348 = vmul.f32 %v268, %v344
    %v349 = vmul.f32 %v146, %v244
    %v350 = vmul.f32 %v169, %v244
    %v351 = vmul.f32 %v149, %v249
    %v352 = vmul.f32 %v172, %v249
    %v353 = vadd.f32 %v349, %v254
    %v354 = vadd.f32 %v350, %v254
    %v355 = vadd.f32 %v351, %v259
    %v356 = vadd.f32 %v352, %v259
    %v357 = vxor.u32 %v353, 2147483648
    %v358 = vxor.u32 %v354, 2147483648
    %v359 = vxor.u32 %v355, 2147483648
    %v360 = vxor.u32 %v356, 2147483648
    %v361 = vmul.f32 %v357, 1.442695
    %v362 = vpow.pop %v361
    %v363 = vmul.f32 %v358, 1.442695
    %v364 = vpow.pop %v363
    %v365 = vmul.f32 %v359, 1.442695
    %v366 = vpow.pop %v365
    %v367 = vmul.f32 %v360, 1.442695
    %v368 = vpow.pop %v367
    %v369 = vadd.f32 %v362, 1.0
    %v370 = vadd.f32 %v364, 1.0
    %v371 = vadd.f32 %v366, 1.0
    %v372 = vadd.f32 %v368, 1.0
    %v373 = vrcp.pop %v369
    %v374 = vmul.f32 %v369, %v373
    %v375 = vsub.f32 1.0, %v374
    %v376 = vmul.f32 %v373, %v375
    %v377 = vadd.f32 %v373, %v376
    %vm378 = vweird.f32 %v369
    %vm379 = vweird.f32 %v373
    %vm380 = vmor %vm378, %vm379
    %v381 = vsel %vm380, %v373, %v377
    %v382 = vand.u32 2147483647, %v369
    %vm383 = vcmp.eq.f32.partialorder %v382, 8.507059e+37
    %v384 = vand.u32 %v369, 2147483648
    %v385 = vor.u32 1.1754944e-38, %v384
    %v386 = vsel %vm383, %v385, %v381
    %v387 = vmul.f32 1.0, %v386
    %v388 = vrcp.pop %v370
    %v389 = vmul.f32 %v370, %v388
    %v390 = vsub.f32 1.0, %v389
    %v391 = vmul.f32 %v388, %v390
    %v392 = vadd.f32 %v388, %v391
    %vm393 = vweird.f32 %v370
    %vm394 = vweird.f32 %v388
    %vm395 = vmor %vm393, %vm394
    %v396 = vsel %vm395, %v388, %v392
    %v397 = vand.u32 2147483647, %v370
    %vm398 = vcmp.eq.f32.partialorder %v397, 8.507059e+37
    %v399 = vand.u32 %v370, 2147483648
    %v400 = vor.u32 1.1754944e-38, %v399
    %v401 = vsel %vm398, %v400, %v396
    %v402 = vmul.f32 1.0, %v401
    %v403 = vrcp.pop %v371
    %v404 = vmul.f32 %v371, %v403
    %v405 = vsub.f32 1.0, %v404
    %v406 = vmul.f32 %v403, %v405
    %v407 = vadd.f32 %v403, %v406
    %vm408 = vweird.f32 %v371
    %vm409 = vweird.f32 %v403
    %vm410 = vmor %vm408, %vm409
    %v411 = vsel %vm410, %v403, %v407
    %v412 = vand.u32 2147483647, %v371
    %vm413 = vcmp.eq.f32.partialorder %v412, 8.507059e+37
    %v414 = vand.u32 %v371, 2147483648
    %v415 = vor.u32 1.1754944e-38, %v414
    %v416 = vsel %vm413, %v415, %v411
    %v417 = vmul.f32 1.0, %v416
    %v418 = vrcp.pop %v372
    %v419 = vmul.f32 %v372, %v418
    %v420 = vsub.f32 1.0, %v419
    %v421 = vmul.f32 %v418, %v420
    %v422 = vadd.f32 %v418, %v421
    %vm423 = vweird.f32 %v372
    %vm424 = vweird.f32 %v418
    %vm425 = vmor %vm423, %vm424
    %v426 = vsel %vm425, %v418, %v422
    %v427 = vand.u32 2147483647, %v372
    %vm428 = vcmp.eq.f32.partialorder %v427, 8.507059e+37
    %v429 = vand.u32 %v372, 2147483648
    %v430 = vor.u32 1.1754944e-38, %v429
    %v431 = vsel %vm428, %v430, %v426
    %v432 = vmul.f32 1.0, %v431
    %v433 = vmul.f32 %v353, %v387
    %v434 = vmul.f32 %v354, %v402
    %v435 = vmul.f32 %v355, %v417
    %v436 = vmul.f32 %v356, %v432
    %v437 = vlaneseq
    %v438 = vand.u32 %v437, 127
    %v439 = vadd.s32 %v438, 128
    %vm440 = vcmp.lt.s32.totalorder %v438, 0
    %v441 = vsub.s32 0, %v438
    %v442 = vsel %vm440, %v441, %v438
    %v443 = vshrl.u32 %v442, 4
    %v444 = vand.u32 %v442, 15
    %v445 = vsub.s32 0, %v444
    %v446 = vsel %vm440, %v445, %v444
    %vm447 = vcmp.lt.s32.totalorder %v439, 0
    %v448 = vsub.s32 0, %v439
    %v449 = vsel %vm447, %v448, %v439
    %v450 = vshrl.u32 %v449, 4
    %v451 = vand.u32 %v449, 15
    %v452 = vsub.s32 0, %v451
    %v453 = vsel %vm447, %v452, %v451
    %vm454 = vcmp.ne.s32.totalorder %v446, 0
    %vm455 = vcmp.ne.s32.totalorder %v453, 0
    %vm456 = vcmp.lt.s32.totalorder %v446, 0
    %vm457 = vcmp.lt.s32.totalorder %v453, 0
    %vm458 = vmand %vm456, %vm454
    %vm459 = vmand %vm457, %vm455
    %v460 = vadd.s32 %v446, 16
    %v461 = vadd.s32 %v453, 16
    %v462 = vsel %vm458, %v460, %v446
    %v463 = vsel %vm459, %v461, %v453
    %v464 = vld [vmem:[%s4] sm:$0xff]
    %v465 = vld [vmem:[%s4 + $0x8] sm:$0xff]
    %v466 = vadd.s32 %v462, 4294967295
    %v467 = vadd.s32 %v463, 4294967295
    %vm468 = vcmp.ge.s32.totalorder %v466, 0
    %vm469 = vcmp.ge.s32.totalorder %v467, 0
    %vm470 = vcmp.lt.s32.totalorder %v466, 16
    %vm471 = vcmp.lt.s32.totalorder %v467, 16
    %vm472 = vmand %vm468, %vm470
    %vm473 = vmand %vm469, %vm471
    %v474 = vsel %vm472, 1, 0
    %v475 = vsel %vm473, 1, 0
    %v476 = vcvt.s32.f32 %v474
    %v477 = vcvt.s32.f32 %v475
    %479 = vset.pattern.permute.xlu0 0
    %480 = vperm.xlu0 %479, %v464
    %v481 = vpop.permute.xlu0 %480
    %484 = vset.pattern.permute.xlu0 0
    %485 = vperm.xlu0 %484, %v465
    %v486 = vpop.permute.xlu0 %485
    %v488 = vmul.f32 %v481, %v476
    %v489 = vmul.f32 %v481, %v477
    %v490 = vmul.f32 %v486, %v476
    %v491 = vmul.f32 %v486, %v477
    %v492 = vadd.s32 %v462, 1
    %v493 = vadd.s32 %v463, 1
    %vm494 = vcmp.ge.s32.totalorder %v492, 0
    %vm495 = vcmp.ge.s32.totalorder %v493, 0
    %vm496 = vcmp.lt.s32.totalorder %v492, 16
    %vm497 = vcmp.lt.s32.totalorder %v493, 16
    %vm498 = vmand %vm494, %vm496
    %vm499 = vmand %vm495, %vm497
    %v500 = vsel %vm498, 1, 0
    %v501 = vsel %vm499, 1, 0
    %v502 = vcvt.s32.f32 %v500
    %v503 = vcvt.s32.f32 %v501
    %504 = vset.pattern.permute.xlu0 2
    %505 = vperm.xlu0 %504, %v464
    %v506 = vpop.permute.xlu0 %505
    %508 = vset.pattern.permute.xlu0 2
    %509 = vperm.xlu0 %508, %v465
    %v510 = vpop.permute.xlu0 %509
    %v512 = vmul.f32 %v506, %v502
    %v513 = vmul.f32 %v506, %v503
    %v514 = vmul.f32 %v510, %v502
    %v515 = vmul.f32 %v510, %v503
    %516 = vset.pattern.permute.xlu0 3
    %517 = vperm.xlu0 %516, %v464
    %v518 = vpop.permute.xlu0 %517
    %520 = vset.pattern.permute.xlu0 3
    %521 = vperm.xlu0 %520, %v465
    %v522 = vpop.permute.xlu0 %521
    %v524 = vmul.f32 %v518, %v476
    %v525 = vmul.f32 %v518, %v477
    %v526 = vmul.f32 %v522, %v476
    %v527 = vmul.f32 %v522, %v477
    %528 = vset.pattern.permute.xlu0 5
    %529 = vperm.xlu0 %528, %v464
    %v530 = vpop.permute.xlu0 %529
    %532 = vset.pattern.permute.xlu0 5
    %533 = vperm.xlu0 %532, %v465
    %v534 = vpop.permute.xlu0 %533
    %v536 = vmul.f32 %v530, %v502
    %v537 = vmul.f32 %v530, %v503
    %v538 = vmul.f32 %v534, %v502
    %v539 = vmul.f32 %v534, %v503
    %540 = vset.pattern.permute.xlu0 6
    %541 = vperm.xlu0 %540, %v464
    %v542 = vpop.permute.xlu0 %541
    %544 = vset.pattern.permute.xlu0 6
    %545 = vperm.xlu0 %544, %v465
    %v546 = vpop.permute.xlu0 %545
    %v548 = vmul.f32 %v542, %v476
    %v549 = vmul.f32 %v542, %v477
    %v550 = vmul.f32 %v546, %v476
    %v551 = vmul.f32 %v546, %v477
    %552 = vset.pattern.permute.xlu0 8
    %553 = vperm.xlu0 %552, %v464
    %v554 = vpop.permute.xlu0 %553
    %556 = vset.pattern.permute.xlu0 8
    %557 = vperm.xlu0 %556, %v465
    %v558 = vpop.permute.xlu0 %557
    %v560 = vmul.f32 %v554, %v502
    %v561 = vmul.f32 %v554, %v503
    %v562 = vmul.f32 %v558, %v502
    %v563 = vmul.f32 %v558, %v503
    %vm564 = vcmask 138240
    %565 = vst.msk [vmem:[#allocation2] sm:$0xff] %vm564, 0.0
    %566 = vst.msk [vmem:[#allocation2 + $0x18] sm:$0xff] %vm564, 0.0
    %vm567 = vcmask 277640
    %568 = vst.msk [vmem:[#allocation2 + $0x10] sm:$0xff] %vm567, 0.0
    %569 = vst.msk [vmem:[#allocation2 + $0x28] sm:$0xff] %vm567, 0.0
    %574 = vrot.lane.b32.xlu0 %v345, 17
    %v575 = vpop.permute.xlu0 %574
    %576 = vrot.lane.b32.xlu0 %v346, 17
    %v577 = vpop.permute.xlu0 %576
    %578 = vrot.lane.b32.xlu0 %v347, 17
    %v579 = vpop.permute.xlu0 %578
    %580 = vrot.lane.b32.xlu0 %v348, 17
    %v581 = vpop.permute.xlu0 %580
    %v582 = vsel %vm564, %v575, %v577
    %v583 = vsel %vm564, %v579, %v581
    %vm590 = vcmask 1047688
    %591 = vst.msk [vmem:[#allocation2] sm:$0xff] %vm590, %v575
    %592 = vst [vmem:[#allocation2 + $0x8] sm:$0xff] %v582
    %593 = vst.msk [vmem:[#allocation2 + $0x10] sm:$0xff] %vm564, %v577
    %594 = vst.msk [vmem:[#allocation2 + $0x18] sm:$0xff] %vm590, %v579
    %595 = vst [vmem:[#allocation2 + $0x20] sm:$0xff] %v583
    %596 = vst.msk [vmem:[#allocation2 + $0x28] sm:$0xff] %vm564, %v581
    %v597 = vld [vmem:[#allocation2] sm:$0xff]
    %v598 = vld [vmem:[#allocation2 + $0x8] sm:$0xff]
    %v599 = vld [vmem:[#allocation2 + $0x18] sm:$0xff]
    %v600 = vld [vmem:[#allocation2 + $0x20] sm:$0xff]
    %v601 = vmul.f32 %v597, %v488
    %v602 = vmul.f32 %v598, %v489
    %v603 = vmul.f32 %v599, %v490
    %v604 = vmul.f32 %v600, %v491
    %v605 = vadd.f32 %v601, 0.0
    %v606 = vadd.f32 %v602, 0.0
    %v607 = vadd.f32 %v603, 0.0
    %v608 = vadd.f32 %v604, 0.0
    %v609 = vld [vmem:[#allocation2 + $0x10] sm:$0xff]
    %v610 = vld [vmem:[#allocation2 + $0x28] sm:$0xff]
    %611 = vset.pattern.permute.xlu0 1
    %612 = vperm.xlu0 %611, %v464
    %v613 = vpop.permute.xlu0 %612
    %615 = vset.pattern.permute.xlu0 1
    %616 = vperm.xlu0 %615, %v465
    %v617 = vpop.permute.xlu0 %616
    %v619 = vmul.f32 %v597, %v613
    %v620 = vmul.f32 %v598, %v613
    %v621 = vmul.f32 %v609, %v613
    %v622 = vmul.f32 %v599, %v617
    %v623 = vmul.f32 %v600, %v617
    %v624 = vmul.f32 %v610, %v617
    %631 = vrot.lane.b32.xlu0 %v619, 127
    %v632 = vpop.permute.xlu0 %631
    %633 = vrot.lane.b32.xlu0 %v620, 127
    %v634 = vpop.permute.xlu0 %633
    %635 = vrot.lane.b32.xlu0 %v621, 127
    %v636 = vpop.permute.xlu0 %635
    %637 = vrot.lane.b32.xlu0 %v622, 127
    %v638 = vpop.permute.xlu0 %637
    %639 = vrot.lane.b32.xlu0 %v623, 127
    %v640 = vpop.permute.xlu0 %639
    %641 = vrot.lane.b32.xlu0 %v624, 127
    %v642 = vpop.permute.xlu0 %641
    %vm643 = vcmask 1039360
    %v644 = vsel %vm643, %v632, %v634
    %v645 = vsel %vm643, %v634, %v636
    %v646 = vsel %vm643, %v638, %v640
    %v647 = vsel %vm643, %v640, %v642
    %v652 = vadd.f32 %v605, %v644
    %v653 = vadd.f32 %v606, %v645
    %v654 = vadd.f32 %v607, %v646
    %v655 = vadd.f32 %v608, %v647
    %660 = vrot.lane.b32.xlu0 %v512, 2
    %v661 = vpop.permute.xlu0 %660
    %662 = vrot.lane.b32.xlu0 %v513, 2
    %v663 = vpop.permute.xlu0 %662
    %664 = vrot.lane.b32.xlu0 %v514, 2
    %v665 = vpop.permute.xlu0 %664
    %666 = vrot.lane.b32.xlu0 %v515, 2
    %v667 = vpop.permute.xlu0 %666
    %vm668 = vcmask 15360
    %v669 = vsel %vm668, %v661, %v663
    %v670 = vsel %vm668, %v665, %v667
    %v677 = vmul.f32 %v597, %v661
    %v678 = vmul.f32 %v598, %v669
    %v679 = vmul.f32 %v609, %v663
    %v680 = vmul.f32 %v599, %v665
    %v681 = vmul.f32 %v600, %v670
    %v682 = vmul.f32 %v610, %v667
    %689 = vrot.lane.b32.xlu0 %v677, 126
    %v690 = vpop.permute.xlu0 %689
    %691 = vrot.lane.b32.xlu0 %v678, 126
    %v692 = vpop.permute.xlu0 %691
    %693 = vrot.lane.b32.xlu0 %v679, 126
    %v694 = vpop.permute.xlu0 %693
    %695 = vrot.lane.b32.xlu0 %v680, 126
    %v696 = vpop.permute.xlu0 %695
    %697 = vrot.lane.b32.xlu0 %v681, 126
    %v698 = vpop.permute.xlu0 %697
    %699 = vrot.lane.b32.xlu0 %v682, 126
    %v700 = vpop.permute.xlu0 %699
    %vm701 = vcmask 1031168
    %v702 = vsel %vm701, %v690, %v692
    %v703 = vsel %vm701, %v692, %v694
    %v704 = vsel %vm701, %v696, %v698
    %v705 = vsel %vm701, %v698, %v700
    %v710 = vadd.f32 %v652, %v702
    %v711 = vadd.f32 %v653, %v703
    %v712 = vadd.f32 %v654, %v704
    %v713 = vadd.f32 %v655, %v705
    %718 = vrot.lane.b32.xlu0 %v524, 16
    %v719 = vpop.permute.xlu0 %718
    %720 = vrot.lane.b32.xlu0 %v525, 16
    %v721 = vpop.permute.xlu0 %720
    %722 = vrot.lane.b32.xlu0 %v526, 16
    %v723 = vpop.permute.xlu0 %722
    %724 = vrot.lane.b32.xlu0 %v527, 16
    %v725 = vpop.permute.xlu0 %724
    %vm726 = vcmask 130048
    %v727 = vsel %vm726, %v719, %v721
    %v728 = vsel %vm726, %v723, %v725
    %v735 = vmul.f32 %v597, %v719
    %v736 = vmul.f32 %v598, %v727
    %v737 = vmul.f32 %v609, %v721
    %v738 = vmul.f32 %v599, %v723
    %v739 = vmul.f32 %v600, %v728
    %v740 = vmul.f32 %v610, %v725
    %747 = vrot.lane.b32.xlu0 %v735, 112
    %v748 = vpop.permute.xlu0 %747
    %749 = vrot.lane.b32.xlu0 %v736, 112
    %v750 = vpop.permute.xlu0 %749
    %751 = vrot.lane.b32.xlu0 %v737, 112
    %v752 = vpop.permute.xlu0 %751
    %753 = vrot.lane.b32.xlu0 %v738, 112
    %v754 = vpop.permute.xlu0 %753
    %755 = vrot.lane.b32.xlu0 %v739, 112
    %v756 = vpop.permute.xlu0 %755
    %757 = vrot.lane.b32.xlu0 %v740, 112
    %v758 = vpop.permute.xlu0 %757
    %vm759 = vcmask 916480
    %v760 = vsel %vm759, %v748, %v750
    %v761 = vsel %vm759, %v750, %v752
    %v762 = vsel %vm759, %v754, %v756
    %v763 = vsel %vm759, %v756, %v758
    %v768 = vadd.f32 %v710, %v760
    %v769 = vadd.f32 %v711, %v761
    %v770 = vadd.f32 %v712, %v762
    %v771 = vadd.f32 %v713, %v763
    %772 = vset.pattern.permute.xlu0 4
    %773 = vperm.xlu0 %772, %v464
    %v774 = vpop.permute.xlu0 %773
    %776 = vset.pattern.permute.xlu0 4
    %777 = vperm.xlu0 %776, %v465
    %v778 = vpop.permute.xlu0 %777
    %v780 = vmul.f32 %v597, %v774
    %v781 = vmul.f32 %v598, %v774
    %v782 = vmul.f32 %v609, %v774
    %v783 = vmul.f32 %v599, %v778
    %v784 = vmul.f32 %v600, %v778
    %v785 = vmul.f32 %v610, %v778
    %792 = vrot.lane.b32.xlu0 %v780, 111
    %v793 = vpop.permute.xlu0 %792
    %794 = vrot.lane.b32.xlu0 %v781, 111
    %v795 = vpop.permute.xlu0 %794
    %796 = vrot.lane.b32.xlu0 %v782, 111
    %v797 = vpop.permute.xlu0 %796
    %798 = vrot.lane.b32.xlu0 %v783, 111
    %v799 = vpop.permute.xlu0 %798
    %800 = vrot.lane.b32.xlu0 %v784, 111
    %v801 = vpop.permute.xlu0 %800
    %802 = vrot.lane.b32.xlu0 %v785, 111
    %v803 = vpop.permute.xlu0 %802
    %vm804 = vcmask 908288
    %v805 = vsel %vm804, %v793, %v795
    %v806 = vsel %vm804, %v795, %v797
    %v807 = vsel %vm804, %v799, %v801
    %v808 = vsel %vm804, %v801, %v803
    %v813 = vadd.f32 %v768, %v805
    %v814 = vadd.f32 %v769, %v806
    %v815 = vadd.f32 %v770, %v807
    %v816 = vadd.f32 %v771, %v808
    %821 = vrot.lane.b32.xlu0 %v536, 18
    %v822 = vpop.permute.xlu0 %821
    %823 = vrot.lane.b32.xlu0 %v537, 18
    %v824 = vpop.permute.xlu0 %823
    %825 = vrot.lane.b32.xlu0 %v538, 18
    %v826 = vpop.permute.xlu0 %825
    %827 = vrot.lane.b32.xlu0 %v539, 18
    %v828 = vpop.permute.xlu0 %827
    %vm829 = vcmask 146432
    %v830 = vsel %vm829, %v822, %v824
    %v831 = vsel %vm829, %v826, %v828
    %v838 = vmul.f32 %v597, %v822
    %v839 = vmul.f32 %v598, %v830
    %v840 = vmul.f32 %v609, %v824
    %v841 = vmul.f32 %v599, %v826
    %v842 = vmul.f32 %v600, %v831
    %v843 = vmul.f32 %v610, %v828
    %850 = vrot.lane.b32.xlu0 %v838, 110
    %v851 = vpop.permute.xlu0 %850
    %852 = vrot.lane.b32.xlu0 %v839, 110
    %v853 = vpop.permute.xlu0 %852
    %854 = vrot.lane.b32.xlu0 %v840, 110
    %v855 = vpop.permute.xlu0 %854
    %856 = vrot.lane.b32.xlu0 %v841, 110
    %v857 = vpop.permute.xlu0 %856
    %858 = vrot.lane.b32.xlu0 %v842, 110
    %v859 = vpop.permute.xlu0 %858
    %860 = vrot.lane.b32.xlu0 %v843, 110
    %v861 = vpop.permute.xlu0 %860
    %vm862 = vcmask 900096
    %v863 = vsel %vm862, %v851, %v853
    %v864 = vsel %vm862, %v853, %v855
    %v865 = vsel %vm862, %v857, %v859
    %v866 = vsel %vm862, %v859, %v861
    %v871 = vadd.f32 %v813, %v863
    %v872 = vadd.f32 %v814, %v864
    %v873 = vadd.f32 %v815, %v865
    %v874 = vadd.f32 %v816, %v866
    %879 = vrot.lane.b32.xlu0 %v548, 32
    %v880 = vpop.permute.xlu0 %879
    %881 = vrot.lane.b32.xlu0 %v549, 32
    %v882 = vpop.permute.xlu0 %881
    %883 = vrot.lane.b32.xlu0 %v550, 32
    %v884 = vpop.permute.xlu0 %883
    %885 = vrot.lane.b32.xlu0 %v551, 32
    %v886 = vpop.permute.xlu0 %885
    %vm887 = vcmask 261120
    %v888 = vsel %vm887, %v880, %v882
    %v889 = vsel %vm887, %v884, %v886
    %v896 = vmul.f32 %v597, %v880
    %v897 = vmul.f32 %v598, %v888
    %v898 = vmul.f32 %v609, %v882
    %v899 = vmul.f32 %v599, %v884
    %v900 = vmul.f32 %v600, %v889
    %v901 = vmul.f32 %v610, %v886
    %908 = vrot.lane.b32.xlu0 %v896, 96
    %v909 = vpop.permute.xlu0 %908
    %910 = vrot.lane.b32.xlu0 %v897, 96
    %v911 = vpop.permute.xlu0 %910
    %912 = vrot.lane.b32.xlu0 %v898, 96
    %v913 = vpop.permute.xlu0 %912
    %914 = vrot.lane.b32.xlu0 %v899, 96
    %v915 = vpop.permute.xlu0 %914
    %916 = vrot.lane.b32.xlu0 %v900, 96
    %v917 = vpop.permute.xlu0 %916
    %918 = vrot.lane.b32.xlu0 %v901, 96
    %v919 = vpop.permute.xlu0 %918
    %vm920 = vcmask 785408
    %v921 = vsel %vm920, %v909, %v911
    %v922 = vsel %vm920, %v911, %v913
    %v923 = vsel %vm920, %v915, %v917
    %v924 = vsel %vm920, %v917, %v919
    %v929 = vadd.f32 %v871, %v921
    %v930 = vadd.f32 %v872, %v922
    %v931 = vadd.f32 %v873, %v923
    %v932 = vadd.f32 %v874, %v924
    %933 = vset.pattern.permute.xlu0 7
    %934 = vperm.xlu0 %933, %v464
    %v935 = vpop.permute.xlu0 %934
    %937 = vset.pattern.permute.xlu0 7
    %938 = vperm.xlu0 %937, %v465
    %v939 = vpop.permute.xlu0 %938
    %v941 = vmul.f32 %v597, %v935
    %v942 = vmul.f32 %v598, %v935
    %v943 = vmul.f32 %v609, %v935
    %v944 = vmul.f32 %v599, %v939
    %v945 = vmul.f32 %v600, %v939
    %v946 = vmul.f32 %v610, %v939
    %953 = vrot.lane.b32.xlu0 %v941, 95
    %v954 = vpop.permute.xlu0 %953
    %955 = vrot.lane.b32.xlu0 %v942, 95
    %v956 = vpop.permute.xlu0 %955
    %957 = vrot.lane.b32.xlu0 %v943, 95
    %v958 = vpop.permute.xlu0 %957
    %959 = vrot.lane.b32.xlu0 %v944, 95
    %v960 = vpop.permute.xlu0 %959
    %961 = vrot.lane.b32.xlu0 %v945, 95
    %v962 = vpop.permute.xlu0 %961
    %963 = vrot.lane.b32.xlu0 %v946, 95
    %v964 = vpop.permute.xlu0 %963
    %vm965 = vcmask 777216
    %v966 = vsel %vm965, %v954, %v956
    %v967 = vsel %vm965, %v956, %v958
    %v968 = vsel %vm965, %v960, %v962
    %v969 = vsel %vm965, %v962, %v964
    %v974 = vadd.f32 %v929, %v966
    %v975 = vadd.f32 %v930, %v967
    %v976 = vadd.f32 %v931, %v968
    %v977 = vadd.f32 %v932, %v969
    %982 = vrot.lane.b32.xlu0 %v560, 34
    %v983 = vpop.permute.xlu0 %982
    %984 = vrot.lane.b32.xlu0 %v561, 34
    %v985 = vpop.permute.xlu0 %984
    %986 = vrot.lane.b32.xlu0 %v562, 34
    %v987 = vpop.permute.xlu0 %986
    %988 = vrot.lane.b32.xlu0 %v563, 34
    %v989 = vpop.permute.xlu0 %988
    %vm990 = vcmask 277504
    %v991 = vsel %vm990, %v983, %v985
    %v992 = vsel %vm990, %v987, %v989
    %v999 = vmul.f32 %v597, %v983
    %v1000 = vmul.f32 %v598, %v991
    %v1001 = vmul.f32 %v609, %v985
    %v1002 = vmul.f32 %v599, %v987
    %v1003 = vmul.f32 %v600, %v992
    %v1004 = vmul.f32 %v610, %v989
    %1011 = vrot.lane.b32.xlu0 %v999, 94
    %v1012 = vpop.permute.xlu0 %1011
    %1013 = vrot.lane.b32.xlu0 %v1000, 94
    %v1014 = vpop.permute.xlu0 %1013
    %1015 = vrot.lane.b32.xlu0 %v1001, 94
    %v1016 = vpop.permute.xlu0 %1015
    %1017 = vrot.lane.b32.xlu0 %v1002, 94
    %v1018 = vpop.permute.xlu0 %1017
    %1019 = vrot.lane.b32.xlu0 %v1003, 94
    %v1020 = vpop.permute.xlu0 %1019
    %1021 = vrot.lane.b32.xlu0 %v1004, 94
    %v1022 = vpop.permute.xlu0 %1021
    %vm1023 = vcmask 769024
    %v1024 = vsel %vm1023, %v1012, %v1014
    %v1025 = vsel %vm1023, %v1014, %v1016
    %v1026 = vsel %vm1023, %v1018, %v1020
    %v1027 = vsel %vm1023, %v1020, %v1022
    %v1032 = vadd.f32 %v974, %v1024
    %v1033 = vadd.f32 %v975, %v1025
    %v1034 = vadd.f32 %v976, %v1026
    %v1035 = vadd.f32 %v977, %v1027
    %v1036 = vadd.f32 %v1032, %v1033
    %1037 = vadd.xlane.f32.xlu0 %v1036
    %v1038 = vpop.xlane.xlu0 %1037
    %v1039 = vadd.f32 %v1034, %v1035
    %1040 = vadd.xlane.f32.xlu0 %v1039
    %v1041 = vpop.xlane.xlu0 %1040
    %v1042 = vadd.f32 %v1038, 0.0
    %v1043 = vadd.f32 %v1041, 0.0
    %v1044 = vmul.f32 %v1032, %v1032
    %v1045 = vmul.f32 %v1033, %v1033
    %v1046 = vmul.f32 %v1034, %v1034
    %v1047 = vmul.f32 %v1035, %v1035
    %v1048 = vadd.f32 %v1044, %v1045
    %1049 = vadd.xlane.f32.xlu0 %v1048
    %v1050 = vpop.xlane.xlu0 %1049
    %v1051 = vadd.f32 %v1046, %v1047
    %1052 = vadd.xlane.f32.xlu0 %v1051
    %v1053 = vpop.xlane.xlu0 %1052
    %v1054 = vadd.f32 %v1050, 0.0
    %v1055 = vadd.f32 %v1053, 0.0
    %s1056 = scalar_lea.vmem [#allocation2], 48
    %1057 = vst.msk [vmem:[%s1056] sm:$0xff] %vm564, 0.0
    %1058 = vst.msk [vmem:[%s1056 + $0x18] sm:$0xff] %vm564, 0.0
    %1059 = vst.msk [vmem:[%s1056 + $0x10] sm:$0xff] %vm567, 0.0
    %1060 = vst.msk [vmem:[%s1056 + $0x28] sm:$0xff] %vm567, 0.0
    %1065 = vrot.lane.b32.xlu0 %v433, 17
    %v1066 = vpop.permute.xlu0 %1065
    %1067 = vrot.lane.b32.xlu0 %v434, 17
    %v1068 = vpop.permute.xlu0 %1067
    %1069 = vrot.lane.b32.xlu0 %v435, 17
    %v1070 = vpop.permute.xlu0 %1069
    %1071 = vrot.lane.b32.xlu0 %v436, 17
    %v1072 = vpop.permute.xlu0 %1071
    %v1073 = vsel %vm564, %v1066, %v1068
    %v1074 = vsel %vm564, %v1070, %v1072
    %1081 = vst.msk [vmem:[%s1056] sm:$0xff] %vm590, %v1066
    %1082 = vst [vmem:[%s1056 + $0x8] sm:$0xff] %v1073
    %1083 = vst.msk [vmem:[%s1056 + $0x10] sm:$0xff] %vm564, %v1068
    %1084 = vst.msk [vmem:[%s1056 + $0x18] sm:$0xff] %vm590, %v1070
    %1085 = vst [vmem:[%s1056 + $0x20] sm:$0xff] %v1074
    %1086 = vst.msk [vmem:[%s1056 + $0x28] sm:$0xff] %vm564, %v1072
    %v1087 = vld [vmem:[%s1056] sm:$0xff]
    %v1088 = vld [vmem:[%s1056 + $0x8] sm:$0xff]
    %v1089 = vld [vmem:[%s1056 + $0x18] sm:$0xff]
    %v1090 = vld [vmem:[%s1056 + $0x20] sm:$0xff]
    %v1091 = vmul.f32 %v1087, %v488
    %v1092 = vmul.f32 %v1088, %v489
    %v1093 = vmul.f32 %v1089, %v490
    %v1094 = vmul.f32 %v1090, %v491
    %v1095 = vadd.f32 %v1091, 0.0
    %v1096 = vadd.f32 %v1092, 0.0
    %v1097 = vadd.f32 %v1093, 0.0
    %v1098 = vadd.f32 %v1094, 0.0
    %v1099 = vld [vmem:[%s1056 + $0x10] sm:$0xff]
    %v1100 = vld [vmem:[%s1056 + $0x28] sm:$0xff]
    %v1101 = vmul.f32 %v1087, %v613
    %v1102 = vmul.f32 %v1088, %v613
    %v1103 = vmul.f32 %v1099, %v613
    %v1104 = vmul.f32 %v1089, %v617
    %v1105 = vmul.f32 %v1090, %v617
    %v1106 = vmul.f32 %v1100, %v617
    %1113 = vrot.lane.b32.xlu0 %v1101, 127
    %v1114 = vpop.permute.xlu0 %1113
    %1115 = vrot.lane.b32.xlu0 %v1102, 127
    %v1116 = vpop.permute.xlu0 %1115
    %1117 = vrot.lane.b32.xlu0 %v1103, 127
    %v1118 = vpop.permute.xlu0 %1117
    %1119 = vrot.lane.b32.xlu0 %v1104, 127
    %v1120 = vpop.permute.xlu0 %1119
    %1121 = vrot.lane.b32.xlu0 %v1105, 127
    %v1122 = vpop.permute.xlu0 %1121
    %1123 = vrot.lane.b32.xlu0 %v1106, 127
    %v1124 = vpop.permute.xlu0 %1123
    %v1125 = vsel %vm643, %v1114, %v1116
    %v1126 = vsel %vm643, %v1116, %v1118
    %v1127 = vsel %vm643, %v1120, %v1122
    %v1128 = vsel %vm643, %v1122, %v1124
    %v1133 = vadd.f32 %v1095, %v1125
    %v1134 = vadd.f32 %v1096, %v1126
    %v1135 = vadd.f32 %v1097, %v1127
    %v1136 = vadd.f32 %v1098, %v1128
    %v1137 = vmul.f32 %v1087, %v661
    %v1138 = vmul.f32 %v1088, %v669
    %v1139 = vmul.f32 %v1099, %v663
    %v1140 = vmul.f32 %v1089, %v665
    %v1141 = vmul.f32 %v1090, %v670
    %v1142 = vmul.f32 %v1100, %v667
    %1149 = vrot.lane.b32.xlu0 %v1137, 126
    %v1150 = vpop.permute.xlu0 %1149
    %1151 = vrot.lane.b32.xlu0 %v1138, 126
    %v1152 = vpop.permute.xlu0 %1151
    %1153 = vrot.lane.b32.xlu0 %v1139, 126
    %v1154 = vpop.permute.xlu0 %1153
    %1155 = vrot.lane.b32.xlu0 %v1140, 126
    %v1156 = vpop.permute.xlu0 %1155
    %1157 = vrot.lane.b32.xlu0 %v1141, 126
    %v1158 = vpop.permute.xlu0 %1157
    %1159 = vrot.lane.b32.xlu0 %v1142, 126
    %v1160 = vpop.permute.xlu0 %1159
    %v1161 = vsel %vm701, %v1150, %v1152
    %v1162 = vsel %vm701, %v1152, %v1154
    %v1163 = vsel %vm701, %v1156, %v1158
    %v1164 = vsel %vm701, %v1158, %v1160
    %v1169 = vadd.f32 %v1133, %v1161
    %v1170 = vadd.f32 %v1134, %v1162
    %v1171 = vadd.f32 %v1135, %v1163
    %v1172 = vadd.f32 %v1136, %v1164
    %v1173 = vmul.f32 %v1087, %v719
    %v1174 = vmul.f32 %v1088, %v727
    %v1175 = vmul.f32 %v1099, %v721
    %v1176 = vmul.f32 %v1089, %v723
    %v1177 = vmul.f32 %v1090, %v728
    %v1178 = vmul.f32 %v1100, %v725
    %1185 = vrot.lane.b32.xlu0 %v1173, 112
    %v1186 = vpop.permute.xlu0 %1185
    %1187 = vrot.lane.b32.xlu0 %v1174, 112
    %v1188 = vpop.permute.xlu0 %1187
    %1189 = vrot.lane.b32.xlu0 %v1175, 112
    %v1190 = vpop.permute.xlu0 %1189
    %1191 = vrot.lane.b32.xlu0 %v1176, 112
    %v1192 = vpop.permute.xlu0 %1191
    %1193 = vrot.lane.b32.xlu0 %v1177, 112
    %v1194 = vpop.permute.xlu0 %1193
    %1195 = vrot.lane.b32.xlu0 %v1178, 112
    %v1196 = vpop.permute.xlu0 %1195
    %v1197 = vsel %vm759, %v1186, %v1188
    %v1198 = vsel %vm759, %v1188, %v1190
    %v1199 = vsel %vm759, %v1192, %v1194
    %v1200 = vsel %vm759, %v1194, %v1196
    %v1205 = vadd.f32 %v1169, %v1197
    %v1206 = vadd.f32 %v1170, %v1198
    %v1207 = vadd.f32 %v1171, %v1199
    %v1208 = vadd.f32 %v1172, %v1200
    %v1209 = vmul.f32 %v1087, %v774
    %v1210 = vmul.f32 %v1088, %v774
    %v1211 = vmul.f32 %v1099, %v774
    %v1212 = vmul.f32 %v1089, %v778
    %v1213 = vmul.f32 %v1090, %v778
    %v1214 = vmul.f32 %v1100, %v778
    %1221 = vrot.lane.b32.xlu0 %v1209, 111
    %v1222 = vpop.permute.xlu0 %1221
    %1223 = vrot.lane.b32.xlu0 %v1210, 111
    %v1224 = vpop.permute.xlu0 %1223
    %1225 = vrot.lane.b32.xlu0 %v1211, 111
    %v1226 = vpop.permute.xlu0 %1225
    %1227 = vrot.lane.b32.xlu0 %v1212, 111
    %v1228 = vpop.permute.xlu0 %1227
    %1229 = vrot.lane.b32.xlu0 %v1213, 111
    %v1230 = vpop.permute.xlu0 %1229
    %1231 = vrot.lane.b32.xlu0 %v1214, 111
    %v1232 = vpop.permute.xlu0 %1231
    %v1233 = vsel %vm804, %v1222, %v1224
    %v1234 = vsel %vm804, %v1224, %v1226
    %v1235 = vsel %vm804, %v1228, %v1230
    %v1236 = vsel %vm804, %v1230, %v1232
    %v1241 = vadd.f32 %v1205, %v1233
    %v1242 = vadd.f32 %v1206, %v1234
    %v1243 = vadd.f32 %v1207, %v1235
    %v1244 = vadd.f32 %v1208, %v1236
    %v1245 = vmul.f32 %v1087, %v822
    %v1246 = vmul.f32 %v1088, %v830
    %v1247 = vmul.f32 %v1099, %v824
    %v1248 = vmul.f32 %v1089, %v826
    %v1249 = vmul.f32 %v1090, %v831
    %v1250 = vmul.f32 %v1100, %v828
    %1257 = vrot.lane.b32.xlu0 %v1245, 110
    %v1258 = vpop.permute.xlu0 %1257
    %1259 = vrot.lane.b32.xlu0 %v1246, 110
    %v1260 = vpop.permute.xlu0 %1259
    %1261 = vrot.lane.b32.xlu0 %v1247, 110
    %v1262 = vpop.permute.xlu0 %1261
    %1263 = vrot.lane.b32.xlu0 %v1248, 110
    %v1264 = vpop.permute.xlu0 %1263
    %1265 = vrot.lane.b32.xlu0 %v1249, 110
    %v1266 = vpop.permute.xlu0 %1265
    %1267 = vrot.lane.b32.xlu0 %v1250, 110
    %v1268 = vpop.permute.xlu0 %1267
    %v1269 = vsel %vm862, %v1258, %v1260
    %v1270 = vsel %vm862, %v1260, %v1262
    %v1271 = vsel %vm862, %v1264, %v1266
    %v1272 = vsel %vm862, %v1266, %v1268
    %v1277 = vadd.f32 %v1241, %v1269
    %v1278 = vadd.f32 %v1242, %v1270
    %v1279 = vadd.f32 %v1243, %v1271
    %v1280 = vadd.f32 %v1244, %v1272
    %v1281 = vmul.f32 %v1087, %v880
    %v1282 = vmul.f32 %v1088, %v888
    %v1283 = vmul.f32 %v1099, %v882
    %v1284 = vmul.f32 %v1089, %v884
    %v1285 = vmul.f32 %v1090, %v889
    %v1286 = vmul.f32 %v1100, %v886
    %1293 = vrot.lane.b32.xlu0 %v1281, 96
    %v1294 = vpop.permute.xlu0 %1293
    %1295 = vrot.lane.b32.xlu0 %v1282, 96
    %v1296 = vpop.permute.xlu0 %1295
    %1297 = vrot.lane.b32.xlu0 %v1283, 96
    %v1298 = vpop.permute.xlu0 %1297
    %1299 = vrot.lane.b32.xlu0 %v1284, 96
    %v1300 = vpop.permute.xlu0 %1299
    %1301 = vrot.lane.b32.xlu0 %v1285, 96
    %v1302 = vpop.permute.xlu0 %1301
    %1303 = vrot.lane.b32.xlu0 %v1286, 96
    %v1304 = vpop.permute.xlu0 %1303
    %v1305 = vsel %vm920, %v1294, %v1296
    %v1306 = vsel %vm920, %v1296, %v1298
    %v1307 = vsel %vm920, %v1300, %v1302
    %v1308 = vsel %vm920, %v1302, %v1304
    %v1313 = vadd.f32 %v1277, %v1305
    %v1314 = vadd.f32 %v1278, %v1306
    %v1315 = vadd.f32 %v1279, %v1307
    %v1316 = vadd.f32 %v1280, %v1308
    %v1317 = vmul.f32 %v1087, %v935
    %v1318 = vmul.f32 %v1088, %v935
    %v1319 = vmul.f32 %v1099, %v935
    %v1320 = vmul.f32 %v1089, %v939
    %v1321 = vmul.f32 %v1090, %v939
    %v1322 = vmul.f32 %v1100, %v939
    %1329 = vrot.lane.b32.xlu0 %v1317, 95
    %v1330 = vpop.permute.xlu0 %1329
    %1331 = vrot.lane.b32.xlu0 %v1318, 95
    %v1332 = vpop.permute.xlu0 %1331
    %1333 = vrot.lane.b32.xlu0 %v1319, 95
    %v1334 = vpop.permute.xlu0 %1333
    %1335 = vrot.lane.b32.xlu0 %v1320, 95
    %v1336 = vpop.permute.xlu0 %1335
    %1337 = vrot.lane.b32.xlu0 %v1321, 95
    %v1338 = vpop.permute.xlu0 %1337
    %1339 = vrot.lane.b32.xlu0 %v1322, 95
    %v1340 = vpop.permute.xlu0 %1339
    %v1341 = vsel %vm965, %v1330, %v1332
    %v1342 = vsel %vm965, %v1332, %v1334
    %v1343 = vsel %vm965, %v1336, %v1338
    %v1344 = vsel %vm965, %v1338, %v1340
    %v1349 = vadd.f32 %v1313, %v1341
    %v1350 = vadd.f32 %v1314, %v1342
    %v1351 = vadd.f32 %v1315, %v1343
    %v1352 = vadd.f32 %v1316, %v1344
    %v1353 = vmul.f32 %v1087, %v983
    %v1354 = vmul.f32 %v1088, %v991
    %v1355 = vmul.f32 %v1099, %v985
    %v1356 = vmul.f32 %v1089, %v987
    %v1357 = vmul.f32 %v1090, %v992
    %v1358 = vmul.f32 %v1100, %v989
    %1365 = vrot.lane.b32.xlu0 %v1353, 94
    %v1366 = vpop.permute.xlu0 %1365
    %1367 = vrot.lane.b32.xlu0 %v1354, 94
    %v1368 = vpop.permute.xlu0 %1367
    %1369 = vrot.lane.b32.xlu0 %v1355, 94
    %v1370 = vpop.permute.xlu0 %1369
    %1371 = vrot.lane.b32.xlu0 %v1356, 94
    %v1372 = vpop.permute.xlu0 %1371
    %1373 = vrot.lane.b32.xlu0 %v1357, 94
    %v1374 = vpop.permute.xlu0 %1373
    %1375 = vrot.lane.b32.xlu0 %v1358, 94
    %v1376 = vpop.permute.xlu0 %1375
    %v1377 = vsel %vm1023, %v1366, %v1368
    %v1378 = vsel %vm1023, %v1368, %v1370
    %v1379 = vsel %vm1023, %v1372, %v1374
    %v1380 = vsel %vm1023, %v1374, %v1376
    %v1385 = vadd.f32 %v1349, %v1377
    %v1386 = vadd.f32 %v1350, %v1378
    %v1387 = vadd.f32 %v1351, %v1379
    %v1388 = vadd.f32 %v1352, %v1380
    %v1389 = vadd.f32 %v1385, %v1386
    %1390 = vadd.xlane.f32.xlu0 %v1389
    %v1391 = vpop.xlane.xlu0 %1390
    %v1392 = vadd.f32 %v1387, %v1388
    %1393 = vadd.xlane.f32.xlu0 %v1392
    %v1394 = vpop.xlane.xlu0 %1393
    %v1395 = vadd.f32 %v1042, %v1391
    %v1396 = vadd.f32 %v1043, %v1394
    %v1397 = vmul.f32 %v1385, %v1385
    %v1398 = vmul.f32 %v1386, %v1386
    %v1399 = vmul.f32 %v1387, %v1387
    %v1400 = vmul.f32 %v1388, %v1388
    %v1401 = vadd.f32 %v1397, %v1398
    %1402 = vadd.xlane.f32.xlu0 %v1401
    %v1403 = vpop.xlane.xlu0 %1402
    %v1404 = vadd.f32 %v1399, %v1400
    %1405 = vadd.xlane.f32.xlu0 %v1404
    %v1406 = vpop.xlane.xlu0 %1405
    %v1407 = vadd.f32 %v1054, %v1403
    %v1408 = vadd.f32 %v1055, %v1406
    %v1409 = vmul.f32 %v1395, %v200
    %v1410 = vmul.f32 %v1396, %v200
    %v1411 = vmul.f32 %v1407, %v200
    %v1412 = vmul.f32 %v1408, %v200
    %v1413 = vmul.f32 %v1409, %v1409
    %v1414 = vmul.f32 %v1410, %v1410
    %v1415 = vsub.f32 %v1411, %v1413
    %v1416 = vsub.f32 %v1412, %v1414
    %v1417 = vld [vmem:[%s5] sm:$0xff]
    %v1418 = vld [vmem:[%s5 + $0x8] sm:$0xff]
    %v1419 = vadd.f32 %v1415, 1e-05
    %v1420 = vadd.f32 %v1416, 1e-05
    %v1421 = vrsqrt.pop %v1419
    %v1422 = vmul.f32 %v1421, %v1419
    %v1423 = vmul.f32 %v1422, %v1421
    %v1424 = vmul.f32 0.5, %v1423
    %v1425 = vsub.f32 1.5, %v1424
    %v1426 = vmul.f32 %v1421, %v1425
    %vm1427 = vweird.f32 %v1419
    %vm1428 = vweird.f32 %v1421
    %vm1429 = vmor %vm1427, %vm1428
    %v1430 = vsel %vm1429, %v1421, %v1426
    %v1431 = vrsqrt.pop %v1420
    %v1432 = vmul.f32 %v1431, %v1420
    %v1433 = vmul.f32 %v1432, %v1431
    %v1434 = vmul.f32 0.5, %v1433
    %v1435 = vsub.f32 1.5, %v1434
    %v1436 = vmul.f32 %v1431, %v1435
    %vm1437 = vweird.f32 %v1420
    %vm1438 = vweird.f32 %v1431
    %vm1439 = vmor %vm1437, %vm1438
    %v1440 = vsel %vm1439, %v1431, %v1436
    %v1441 = vmul.f32 %v1417, %v1430
    %v1442 = vmul.f32 %v1418, %v1440
    %v1443 = vld [vmem:[%s6] sm:$0xff]
    %v1444 = vld [vmem:[%s6 + $0x8] sm:$0xff]
    %v1445 = vmul.f32 %v1409, %v1441
    %v1446 = vmul.f32 %v1410, %v1442
    %v1447 = vsub.f32 %v1443, %v1445
    %v1448 = vsub.f32 %v1444, %v1446
    %1450 = vset.pattern.permute.xlu0 0
    %1451 = vperm.xlu0 %1450, %v1441
    %v1452 = vpop.permute.xlu0 %1451
    %1455 = vset.pattern.permute.xlu0 0
    %1456 = vperm.xlu0 %1455, %v1442
    %v1457 = vpop.permute.xlu0 %1456
    %1460 = vset.pattern.permute.xlu0 0
    %1461 = vperm.xlu0 %1460, %v1447
    %v1462 = vpop.permute.xlu0 %1461
    %1465 = vset.pattern.permute.xlu0 0
    %1466 = vperm.xlu0 %1465, %v1448
    %v1467 = vpop.permute.xlu0 %1466
    %v1469 = vld [vmem:[%s11] sm:$0xff]
    %v1470 = vld [vmem:[%s7] sm:$0xf]
    %v1471 = vld [vmem:[%s8] sm:$0xf]
    %v1472 = vld [vmem:[%s9] sm:$0xff]
    %v1473 = vld [vmem:[%s9 + $0x8] sm:$0xff]
    %v1474 = vld [vmem:[%s10] sm:$0xff]
    %v1475 = vld [vmem:[%s10 + $0x8] sm:$0xff]
    %v1476 = vmul.f32 %v1032, %v1452
    %v1477 = vmul.f32 %v1033, %v1452
    %v1478 = vmul.f32 %v1034, %v1457
    %v1479 = vmul.f32 %v1035, %v1457
    %v1480 = vadd.f32 %v1476, %v1462
    %v1481 = vadd.f32 %v1477, %v1462
    %v1482 = vadd.f32 %v1478, %v1467
    %v1483 = vadd.f32 %v1479, %v1467
    %v1484 = vxor.u32 %v1480, 2147483648
    %v1485 = vxor.u32 %v1481, 2147483648
    %v1486 = vxor.u32 %v1482, 2147483648
    %v1487 = vxor.u32 %v1483, 2147483648
    %v1488 = vmul.f32 %v1484, 1.442695
    %v1489 = vpow.pop %v1488
    %v1490 = vmul.f32 %v1485, 1.442695
    %v1491 = vpow.pop %v1490
    %v1492 = vmul.f32 %v1486, 1.442695
    %v1493 = vpow.pop %v1492
    %v1494 = vmul.f32 %v1487, 1.442695
    %v1495 = vpow.pop %v1494
    %v1496 = vadd.f32 %v1489, 1.0
    %v1497 = vadd.f32 %v1491, 1.0
    %v1498 = vadd.f32 %v1493, 1.0
    %v1499 = vadd.f32 %v1495, 1.0
    %v1500 = vrcp.pop %v1496
    %v1501 = vmul.f32 %v1496, %v1500
    %v1502 = vsub.f32 1.0, %v1501
    %v1503 = vmul.f32 %v1500, %v1502
    %v1504 = vadd.f32 %v1500, %v1503
    %vm1505 = vweird.f32 %v1496
    %vm1506 = vweird.f32 %v1500
    %vm1507 = vmor %vm1505, %vm1506
    %v1508 = vsel %vm1507, %v1500, %v1504
    %v1509 = vand.u32 2147483647, %v1496
    %vm1510 = vcmp.eq.f32.partialorder %v1509, 8.507059e+37
    %v1511 = vand.u32 %v1496, 2147483648
    %v1512 = vor.u32 1.1754944e-38, %v1511
    %v1513 = vsel %vm1510, %v1512, %v1508
    %v1514 = vmul.f32 1.0, %v1513
    %v1515 = vrcp.pop %v1497
    %v1516 = vmul.f32 %v1497, %v1515
    %v1517 = vsub.f32 1.0, %v1516
    %v1518 = vmul.f32 %v1515, %v1517
    %v1519 = vadd.f32 %v1515, %v1518
    %vm1520 = vweird.f32 %v1497
    %vm1521 = vweird.f32 %v1515
    %vm1522 = vmor %vm1520, %vm1521
    %v1523 = vsel %vm1522, %v1515, %v1519
    %v1524 = vand.u32 2147483647, %v1497
    %vm1525 = vcmp.eq.f32.partialorder %v1524, 8.507059e+37
    %v1526 = vand.u32 %v1497, 2147483648
    %v1527 = vor.u32 1.1754944e-38, %v1526
    %v1528 = vsel %vm1525, %v1527, %v1523
    %v1529 = vmul.f32 1.0, %v1528
    %v1530 = vrcp.pop %v1498
    %v1531 = vmul.f32 %v1498, %v1530
    %v1532 = vsub.f32 1.0, %v1531
    %v1533 = vmul.f32 %v1530, %v1532
    %v1534 = vadd.f32 %v1530, %v1533
    %vm1535 = vweird.f32 %v1498
    %vm1536 = vweird.f32 %v1530
    %vm1537 = vmor %vm1535, %vm1536
    %v1538 = vsel %vm1537, %v1530, %v1534
    %v1539 = vand.u32 2147483647, %v1498
    %vm1540 = vcmp.eq.f32.partialorder %v1539, 8.507059e+37
    %v1541 = vand.u32 %v1498, 2147483648
    %v1542 = vor.u32 1.1754944e-38, %v1541
    %v1543 = vsel %vm1540, %v1542, %v1538
    %v1544 = vmul.f32 1.0, %v1543
    %v1545 = vrcp.pop %v1499
    %v1546 = vmul.f32 %v1499, %v1545
    %v1547 = vsub.f32 1.0, %v1546
    %v1548 = vmul.f32 %v1545, %v1547
    %v1549 = vadd.f32 %v1545, %v1548
    %vm1550 = vweird.f32 %v1499
    %vm1551 = vweird.f32 %v1545
    %vm1552 = vmor %vm1550, %vm1551
    %v1553 = vsel %vm1552, %v1545, %v1549
    %v1554 = vand.u32 2147483647, %v1499
    %vm1555 = vcmp.eq.f32.partialorder %v1554, 8.507059e+37
    %v1556 = vand.u32 %v1499, 2147483648
    %v1557 = vor.u32 1.1754944e-38, %v1556
    %v1558 = vsel %vm1555, %v1557, %v1553
    %v1559 = vmul.f32 1.0, %v1558
    %v1560 = vmul.f32 %v1480, %v1514
    %v1561 = vmul.f32 %v1481, %v1529
    %v1562 = vmul.f32 %v1482, %v1544
    %v1563 = vmul.f32 %v1483, %v1559
    %v1564 = vadd.f32 %v1560, %v1561
    %1565 = vadd.xlane.f32.xlu0 %v1564
    %v1566 = vpop.xlane.xlu0 %1565
    %v1567 = vadd.f32 %v1562, %v1563
    %1568 = vadd.xlane.f32.xlu0 %v1567
    %v1569 = vpop.xlane.xlu0 %1568
    %v1570 = vmul.f32 %v1566, 0.00390625
    %v1571 = vmul.f32 %v1569, 0.00390625
    %v1573 = vsel %vm726, %v1470, 0
    %1575 = vmatpush.msra.mxu0 0.0
    %1576 = vmatpush.msra.mxu0 0.0
    %1577 = vmatpush.msra.mxu0 0.0
    %1578 = vmatpush.msra.mxu0 0.0
    %1579 = vmatpush.msra.mxu0 0.0
    %1580 = vmatpush.msra.mxu0 0.0
    %1581 = vmatpush.msra.mxu0 0.0
    %1582 = vmatpush.msra.mxu0 0.0
    %1583 = vmatpush.msra.mxu0 0.0
    %1584 = vmatpush.msra.mxu0 0.0
    %1585 = vmatpush.msra.mxu0 0.0
    %1586 = vmatpush.msra.mxu0 0.0
    %1587 = vmatpush.msra.mxu0 0.0
    %1588 = vmatpush.msra.mxu0 0.0
    %1589 = vmatpush.msra.mxu0 %v1571
    %1590 = vmatpush.msra.mxu0 %v1570
    %1591 = vmatmul.f32.gmra.mxu0 %v1573
    %v1592 = vpop.f32.mrf.mxu0
    %v1593 = vadd.f32 %v1471, %v1592
    %1594 = vdwg.mxu0
    %v1595 = vxor.u32 %v1593, 2147483648
    %v1596 = vmul.f32 %v1595, 1.442695
    %v1597 = vpow.pop %v1596
    %v1598 = vadd.f32 %v1597, 1.0
    %v1599 = vrcp.pop %v1598
    %v1600 = vmul.f32 %v1598, %v1599
    %v1601 = vsub.f32 1.0, %v1600
    %v1602 = vmul.f32 %v1599, %v1601
    %v1603 = vadd.f32 %v1599, %v1602
    %vm1604 = vweird.f32 %v1598
    %vm1605 = vweird.f32 %v1599
    %vm1606 = vmor %vm1604, %vm1605
    %v1607 = vsel %vm1606, %v1599, %v1603
    %v1608 = vand.u32 2147483647, %v1598
    %vm1609 = vcmp.eq.f32.partialorder %v1608, 8.507059e+37
    %v1610 = vand.u32 %v1598, 2147483648
    %v1611 = vor.u32 1.1754944e-38, %v1610
    %v1612 = vsel %vm1609, %v1611, %v1607
    %v1613 = vmul.f32 1.0, %v1612
    %v1614 = vmul.f32 %v1593, %v1613
    %vm1615 = vcmask 31744
    %v1617 = vsel %vm1615, %v1472, 0
    %v1620 = vsel %vm1615, %v1473, 0
    %vm1622 = vcmask 1043456
    %v1624 = vsel %vm1622, %v1614, 0
    %1626 = vmatpush.msra.mxu0 0.0
    %1627 = vmatpush.msra.mxu0 0.0
    %1628 = vmatpush.msra.mxu0 0.0
    %1629 = vmatpush.msra.mxu0 0.0
    %1630 = vmatpush.msra.mxu0 0.0
    %1631 = vmatpush.msra.mxu0 0.0
    %1632 = vmatpush.msra.mxu0 0.0
    %1633 = vmatpush.msra.mxu0 0.0
    %1634 = vmatpush.msra.mxu0 0.0
    %1635 = vmatpush.msra.mxu0 0.0
    %1636 = vmatpush.msra.mxu0 0.0
    %1637 = vmatpush.msra.mxu0 0.0
    %1638 = vmatpush.msra.mxu0 0.0
    %1639 = vmatpush.msra.mxu0 0.0
    %1640 = vmatpush.msra.mxu0 0.0
    %1641 = vmatpush.msra.mxu0 %v1624
    %1642 = vmatmul.f32.gmra.mxu0 %v1617
    %v1643 = vpop.f32.mrf.mxu0
    %v1644 = vadd.f32 %v1474, %v1643
    %1645 = vmatmul.f32.gmra.mxu0 %v1620
    %v1646 = vpop.f32.mrf.mxu0
    %v1647 = vadd.f32 %v1475, %v1646
    %1648 = vdwg.mxu0
    %v1649 = vxor.u32 %v1644, 2147483648
    %v1650 = vxor.u32 %v1647, 2147483648
    %v1651 = vmul.f32 %v1649, 1.442695
    %v1652 = vpow.pop %v1651
    %v1653 = vmul.f32 %v1650, 1.442695
    %v1654 = vpow.pop %v1653
    %v1655 = vadd.f32 %v1652, 1.0
    %v1656 = vadd.f32 %v1654, 1.0
    %v1657 = vrcp.pop %v1655
    %v1658 = vmul.f32 %v1655, %v1657
    %v1659 = vsub.f32 1.0, %v1658
    %v1660 = vmul.f32 %v1657, %v1659
    %v1661 = vadd.f32 %v1657, %v1660
    %vm1662 = vweird.f32 %v1655
    %vm1663 = vweird.f32 %v1657
    %vm1664 = vmor %vm1662, %vm1663
    %v1665 = vsel %vm1664, %v1657, %v1661
    %v1666 = vand.u32 2147483647, %v1655
    %vm1667 = vcmp.eq.f32.partialorder %v1666, 8.507059e+37
    %v1668 = vand.u32 %v1655, 2147483648
    %v1669 = vor.u32 1.1754944e-38, %v1668
    %v1670 = vsel %vm1667, %v1669, %v1665
    %v1671 = vmul.f32 1.0, %v1670
    %v1672 = vrcp.pop %v1656
    %v1673 = vmul.f32 %v1656, %v1672
    %v1674 = vsub.f32 1.0, %v1673
    %v1675 = vmul.f32 %v1672, %v1674
    %v1676 = vadd.f32 %v1672, %v1675
    %vm1677 = vweird.f32 %v1656
    %vm1678 = vweird.f32 %v1672
    %vm1679 = vmor %vm1677, %vm1678
    %v1680 = vsel %vm1679, %v1672, %v1676
    %v1681 = vand.u32 2147483647, %v1656
    %vm1682 = vcmp.eq.f32.partialorder %v1681, 8.507059e+37
    %v1683 = vand.u32 %v1656, 2147483648
    %v1684 = vor.u32 1.1754944e-38, %v1683
    %v1685 = vsel %vm1682, %v1684, %v1680
    %v1686 = vmul.f32 1.0, %v1685
    %1688 = vset.pattern.permute.xlu0 0
    %1689 = vperm.xlu0 %1688, %v1671
    %v1690 = vpop.permute.xlu0 %1689
    %1693 = vset.pattern.permute.xlu0 0
    %1694 = vperm.xlu0 %1693, %v1686
    %v1695 = vpop.permute.xlu0 %1694
    %v1697 = vmul.f32 %v1560, %v1690
    %v1698 = vmul.f32 %v1561, %v1690
    %v1699 = vmul.f32 %v1562, %v1695
    %v1700 = vmul.f32 %v1563, %v1695
    %v1702 = vsel %vm726, %v1469, 0
    %1704 = vmatpush.msra.mxu0 0.0
    %1705 = vmatpush.msra.mxu0 0.0
    %1706 = vmatpush.msra.mxu0 0.0
    %1707 = vmatpush.msra.mxu0 0.0
    %1708 = vmatpush.msra.mxu0 0.0
    %1709 = vmatpush.msra.mxu0 0.0
    %1710 = vmatpush.msra.mxu0 0.0
    %1711 = vmatpush.msra.mxu0 0.0
    %1712 = vmatpush.msra.mxu0 0.0
    %1713 = vmatpush.msra.mxu0 0.0
    %1714 = vmatpush.msra.mxu0 0.0
    %1715 = vmatpush.msra.mxu0 0.0
    %1716 = vmatpush.msra.mxu0 0.0
    %1717 = vmatpush.msra.mxu0 0.0
    %1718 = vmatpush.msra.mxu0 %v1699
    %1719 = vmatpush.msra.mxu0 %v1697
    %1720 = vmatmul.f32.gmra.mxu0 %v1702
    %v1721 = vpop.f32.mrf.mxu0
    %v1722 = vadd.f32 0.0, %v1721
    %1723 = vdwg.mxu0
    %1724 = vmatpush.msra.mxu0 0.0
    %1725 = vmatpush.msra.mxu0 0.0
    %1726 = vmatpush.msra.mxu0 0.0
    %1727 = vmatpush.msra.mxu0 0.0
    %1728 = vmatpush.msra.mxu0 0.0
    %1729 = vmatpush.msra.mxu0 0.0
    %1730 = vmatpush.msra.mxu0 0.0
    %1731 = vmatpush.msra.mxu0 0.0
    %1732 = vmatpush.msra.mxu0 0.0
    %1733 = vmatpush.msra.mxu0 0.0
    %1734 = vmatpush.msra.mxu0 0.0
    %1735 = vmatpush.msra.mxu0 0.0
    %1736 = vmatpush.msra.mxu0 0.0
    %1737 = vmatpush.msra.mxu0 0.0
    %1738 = vmatpush.msra.mxu0 %v1700
    %1739 = vmatpush.msra.mxu0 %v1698
    %1740 = vmatmul.f32.gmra.mxu0 %v1702
    %v1741 = vpop.f32.mrf.mxu0
    %v1742 = vadd.f32 0.0, %v1741
    %1743 = vdwg.mxu0
    %v1744 = vadd.f32 %v1722, %v1742
    %1745 = vadd.xlane.f32.xlu0 %v1744
    %v1746 = vpop.xlane.xlu0 %1745
    %v1747 = vadd.f32 %v1746, 0.0
    %v1748 = vmul.f32 %v1722, %v1722
    %v1749 = vmul.f32 %v1742, %v1742
    %v1750 = vadd.f32 %v1748, %v1749
    %1751 = vadd.xlane.f32.xlu0 %v1750
    %v1752 = vpop.xlane.xlu0 %1751
    %v1753 = vadd.f32 %v1752, 0.0
    %v1754 = vmul.f32 %v1385, %v1452
    %v1755 = vmul.f32 %v1386, %v1452
    %v1756 = vmul.f32 %v1387, %v1457
    %v1757 = vmul.f32 %v1388, %v1457
    %v1758 = vadd.f32 %v1754, %v1462
    %v1759 = vadd.f32 %v1755, %v1462
    %v1760 = vadd.f32 %v1756, %v1467
    %v1761 = vadd.f32 %v1757, %v1467
    %v1762 = vxor.u32 %v1758, 2147483648
    %v1763 = vxor.u32 %v1759, 2147483648
    %v1764 = vxor.u32 %v1760, 2147483648
    %v1765 = vxor.u32 %v1761, 2147483648
    %v1766 = vmul.f32 %v1762, 1.442695
    %v1767 = vpow.pop %v1766
    %v1768 = vmul.f32 %v1763, 1.442695
    %v1769 = vpow.pop %v1768
    %v1770 = vmul.f32 %v1764, 1.442695
    %v1771 = vpow.pop %v1770
    %v1772 = vmul.f32 %v1765, 1.442695
    %v1773 = vpow.pop %v1772
    %v1774 = vadd.f32 %v1767, 1.0
    %v1775 = vadd.f32 %v1769, 1.0
    %v1776 = vadd.f32 %v1771, 1.0
    %v1777 = vadd.f32 %v1773, 1.0
    %v1778 = vrcp.pop %v1774
    %v1779 = vmul.f32 %v1774, %v1778
    %v1780 = vsub.f32 1.0, %v1779
    %v1781 = vmul.f32 %v1778, %v1780
    %v1782 = vadd.f32 %v1778, %v1781
    %vm1783 = vweird.f32 %v1774
    %vm1784 = vweird.f32 %v1778
    %vm1785 = vmor %vm1783, %vm1784
    %v1786 = vsel %vm1785, %v1778, %v1782
    %v1787 = vand.u32 2147483647, %v1774
    %vm1788 = vcmp.eq.f32.partialorder %v1787, 8.507059e+37
    %v1789 = vand.u32 %v1774, 2147483648
    %v1790 = vor.u32 1.1754944e-38, %v1789
    %v1791 = vsel %vm1788, %v1790, %v1786
    %v1792 = vmul.f32 1.0, %v1791
    %v1793 = vrcp.pop %v1775
    %v1794 = vmul.f32 %v1775, %v1793
    %v1795 = vsub.f32 1.0, %v1794
    %v1796 = vmul.f32 %v1793, %v1795
    %v1797 = vadd.f32 %v1793, %v1796
    %vm1798 = vweird.f32 %v1775
    %vm1799 = vweird.f32 %v1793
    %vm1800 = vmor %vm1798, %vm1799
    %v1801 = vsel %vm1800, %v1793, %v1797
    %v1802 = vand.u32 2147483647, %v1775
    %vm1803 = vcmp.eq.f32.partialorder %v1802, 8.507059e+37
    %v1804 = vand.u32 %v1775, 2147483648
    %v1805 = vor.u32 1.1754944e-38, %v1804
    %v1806 = vsel %vm1803, %v1805, %v1801
    %v1807 = vmul.f32 1.0, %v1806
    %v1808 = vrcp.pop %v1776
    %v1809 = vmul.f32 %v1776, %v1808
    %v1810 = vsub.f32 1.0, %v1809
    %v1811 = vmul.f32 %v1808, %v1810
    %v1812 = vadd.f32 %v1808, %v1811
    %vm1813 = vweird.f32 %v1776
    %vm1814 = vweird.f32 %v1808
    %vm1815 = vmor %vm1813, %vm1814
    %v1816 = vsel %vm1815, %v1808, %v1812
    %v1817 = vand.u32 2147483647, %v1776
    %vm1818 = vcmp.eq.f32.partialorder %v1817, 8.507059e+37
    %v1819 = vand.u32 %v1776, 2147483648
    %v1820 = vor.u32 1.1754944e-38, %v1819
    %v1821 = vsel %vm1818, %v1820, %v1816
    %v1822 = vmul.f32 1.0, %v1821
    %v1823 = vrcp.pop %v1777
    %v1824 = vmul.f32 %v1777, %v1823
    %v1825 = vsub.f32 1.0, %v1824
    %v1826 = vmul.f32 %v1823, %v1825
    %v1827 = vadd.f32 %v1823, %v1826
    %vm1828 = vweird.f32 %v1777
    %vm1829 = vweird.f32 %v1823
    %vm1830 = vmor %vm1828, %vm1829
    %v1831 = vsel %vm1830, %v1823, %v1827
    %v1832 = vand.u32 2147483647, %v1777
    %vm1833 = vcmp.eq.f32.partialorder %v1832, 8.507059e+37
    %v1834 = vand.u32 %v1777, 2147483648
    %v1835 = vor.u32 1.1754944e-38, %v1834
    %v1836 = vsel %vm1833, %v1835, %v1831
    %v1837 = vmul.f32 1.0, %v1836
    %v1838 = vmul.f32 %v1758, %v1792
    %v1839 = vmul.f32 %v1759, %v1807
    %v1840 = vmul.f32 %v1760, %v1822
    %v1841 = vmul.f32 %v1761, %v1837
    %v1842 = vadd.f32 %v1838, %v1839
    %1843 = vadd.xlane.f32.xlu0 %v1842
    %v1844 = vpop.xlane.xlu0 %1843
    %v1845 = vadd.f32 %v1840, %v1841
    %1846 = vadd.xlane.f32.xlu0 %v1845
    %v1847 = vpop.xlane.xlu0 %1846
    %v1848 = vmul.f32 %v1844, 0.00390625
    %v1849 = vmul.f32 %v1847, 0.00390625
    %1850 = vmatpush.msra.mxu0 0.0
    %1851 = vmatpush.msra.mxu0 0.0
    %1852 = vmatpush.msra.mxu0 0.0
    %1853 = vmatpush.msra.mxu0 0.0
    %1854 = vmatpush.msra.mxu0 0.0
    %1855 = vmatpush.msra.mxu0 0.0
    %1856 = vmatpush.msra.mxu0 0.0
    %1857 = vmatpush.msra.mxu0 0.0
    %1858 = vmatpush.msra.mxu0 0.0
    %1859 = vmatpush.msra.mxu0 0.0
    %1860 = vmatpush.msra.mxu0 0.0
    %1861 = vmatpush.msra.mxu0 0.0
    %1862 = vmatpush.msra.mxu0 0.0
    %1863 = vmatpush.msra.mxu0 0.0
    %1864 = vmatpush.msra.mxu0 %v1849
    %1865 = vmatpush.msra.mxu0 %v1848
    %1866 = vmatmul.f32.gmra.mxu0 %v1573
    %v1867 = vpop.f32.mrf.mxu0
    %v1868 = vadd.f32 %v1471, %v1867
    %1869 = vdwg.mxu0
    %v1870 = vxor.u32 %v1868, 2147483648
    %v1871 = vmul.f32 %v1870, 1.442695
    %v1872 = vpow.pop %v1871
    %v1873 = vadd.f32 %v1872, 1.0
    %v1874 = vrcp.pop %v1873
    %v1875 = vmul.f32 %v1873, %v1874
    %v1876 = vsub.f32 1.0, %v1875
    %v1877 = vmul.f32 %v1874, %v1876
    %v1878 = vadd.f32 %v1874, %v1877
    %vm1879 = vweird.f32 %v1873
    %vm1880 = vweird.f32 %v1874
    %vm1881 = vmor %vm1879, %vm1880
    %v1882 = vsel %vm1881, %v1874, %v1878
    %v1883 = vand.u32 2147483647, %v1873
    %vm1884 = vcmp.eq.f32.partialorder %v1883, 8.507059e+37
    %v1885 = vand.u32 %v1873, 2147483648
    %v1886 = vor.u32 1.1754944e-38, %v1885
    %v1887 = vsel %vm1884, %v1886, %v1882
    %v1888 = vmul.f32 1.0, %v1887
    %v1889 = vmul.f32 %v1868, %v1888
    %v1891 = vsel %vm1622, %v1889, 0
    %1893 = vmatpush.msra.mxu0 0.0
    %1894 = vmatpush.msra.mxu0 0.0
    %1895 = vmatpush.msra.mxu0 0.0
    %1896 = vmatpush.msra.mxu0 0.0
    %1897 = vmatpush.msra.mxu0 0.0
    %1898 = vmatpush.msra.mxu0 0.0
    %1899 = vmatpush.msra.mxu0 0.0
    %1900 = vmatpush.msra.mxu0 0.0
    %1901 = vmatpush.msra.mxu0 0.0
    %1902 = vmatpush.msra.mxu0 0.0
    %1903 = vmatpush.msra.mxu0 0.0
    %1904 = vmatpush.msra.mxu0 0.0
    %1905 = vmatpush.msra.mxu0 0.0
    %1906 = vmatpush.msra.mxu0 0.0
    %1907 = vmatpush.msra.mxu0 0.0
    %1908 = vmatpush.msra.mxu0 %v1891
    %1909 = vmatmul.f32.gmra.mxu0 %v1617
    %v1910 = vpop.f32.mrf.mxu0
    %v1911 = vadd.f32 %v1474, %v1910
    %1912 = vmatmul.f32.gmra.mxu0 %v1620
    %v1913 = vpop.f32.mrf.mxu0
    %v1914 = vadd.f32 %v1475, %v1913
    %1915 = vdwg.mxu0
    %v1916 = vxor.u32 %v1911, 2147483648
    %v1917 = vxor.u32 %v1914, 2147483648
    %v1918 = vmul.f32 %v1916, 1.442695
    %v1919 = vpow.pop %v1918
    %v1920 = vmul.f32 %v1917, 1.442695
    %v1921 = vpow.pop %v1920
    %v1922 = vadd.f32 %v1919, 1.0
    %v1923 = vadd.f32 %v1921, 1.0
    %v1924 = vrcp.pop %v1922
    %v1925 = vmul.f32 %v1922, %v1924
    %v1926 = vsub.f32 1.0, %v1925
    %v1927 = vmul.f32 %v1924, %v1926
    %v1928 = vadd.f32 %v1924, %v1927
    %vm1929 = vweird.f32 %v1922
    %vm1930 = vweird.f32 %v1924
    %vm1931 = vmor %vm1929, %vm1930
    %v1932 = vsel %vm1931, %v1924, %v1928
    %v1933 = vand.u32 2147483647, %v1922
    %vm1934 = vcmp.eq.f32.partialorder %v1933, 8.507059e+37
    %v1935 = vand.u32 %v1922, 2147483648
    %v1936 = vor.u32 1.1754944e-38, %v1935
    %v1937 = vsel %vm1934, %v1936, %v1932
    %v1938 = vmul.f32 1.0, %v1937
    %v1939 = vrcp.pop %v1923
    %v1940 = vmul.f32 %v1923, %v1939
    %v1941 = vsub.f32 1.0, %v1940
    %v1942 = vmul.f32 %v1939, %v1941
    %v1943 = vadd.f32 %v1939, %v1942
    %vm1944 = vweird.f32 %v1923
    %vm1945 = vweird.f32 %v1939
    %vm1946 = vmor %vm1944, %vm1945
    %v1947 = vsel %vm1946, %v1939, %v1943
    %v1948 = vand.u32 2147483647, %v1923
    %vm1949 = vcmp.eq.f32.partialorder %v1948, 8.507059e+37
    %v1950 = vand.u32 %v1923, 2147483648
    %v1951 = vor.u32 1.1754944e-38, %v1950
    %v1952 = vsel %vm1949, %v1951, %v1947
    %v1953 = vmul.f32 1.0, %v1952
    %1955 = vset.pattern.permute.xlu0 0
    %1956 = vperm.xlu0 %1955, %v1938
    %v1957 = vpop.permute.xlu0 %1956
    %1960 = vset.pattern.permute.xlu0 0
    %1961 = vperm.xlu0 %1960, %v1953
    %v1962 = vpop.permute.xlu0 %1961
    %v1964 = vmul.f32 %v1838, %v1957
    %v1965 = vmul.f32 %v1839, %v1957
    %v1966 = vmul.f32 %v1840, %v1962
    %v1967 = vmul.f32 %v1841, %v1962
    %1968 = vmatpush.msra.mxu0 0.0
    %1969 = vmatpush.msra.mxu0 0.0
    %1970 = vmatpush.msra.mxu0 0.0
    %1971 = vmatpush.msra.mxu0 0.0
    %1972 = vmatpush.msra.mxu0 0.0
    %1973 = vmatpush.msra.mxu0 0.0
    %1974 = vmatpush.msra.mxu0 0.0
    %1975 = vmatpush.msra.mxu0 0.0
    %1976 = vmatpush.msra.mxu0 0.0
    %1977 = vmatpush.msra.mxu0 0.0
    %1978 = vmatpush.msra.mxu0 0.0
    %1979 = vmatpush.msra.mxu0 0.0
    %1980 = vmatpush.msra.mxu0 0.0
    %1981 = vmatpush.msra.mxu0 0.0
    %1982 = vmatpush.msra.mxu0 %v1966
    %1983 = vmatpush.msra.mxu0 %v1964
    %1984 = vmatmul.f32.gmra.mxu0 %v1702
    %v1985 = vpop.f32.mrf.mxu0
    %v1986 = vadd.f32 0.0, %v1985
    %1987 = vdwg.mxu0
    %1988 = vmatpush.msra.mxu0 0.0
    %1989 = vmatpush.msra.mxu0 0.0
    %1990 = vmatpush.msra.mxu0 0.0
    %1991 = vmatpush.msra.mxu0 0.0
    %1992 = vmatpush.msra.mxu0 0.0
    %1993 = vmatpush.msra.mxu0 0.0
    %1994 = vmatpush.msra.mxu0 0.0
    %1995 = vmatpush.msra.mxu0 0.0
    %1996 = vmatpush.msra.mxu0 0.0
    %1997 = vmatpush.msra.mxu0 0.0
    %1998 = vmatpush.msra.mxu0 0.0
    %1999 = vmatpush.msra.mxu0 0.0
    %2000 = vmatpush.msra.mxu0 0.0
    %2001 = vmatpush.msra.mxu0 0.0
    %2002 = vmatpush.msra.mxu0 %v1967
    %2003 = vmatpush.msra.mxu0 %v1965
    %2004 = vmatmul.f32.gmra.mxu0 %v1702
    %v2005 = vpop.f32.mrf.mxu0
    %v2006 = vadd.f32 0.0, %v2005
    %2007 = vdwg.mxu0
    %v2008 = vadd.f32 %v1986, %v2006
    %2009 = vadd.xlane.f32.xlu0 %v2008
    %v2010 = vpop.xlane.xlu0 %2009
    %v2011 = vadd.f32 %v1747, %v2010
    %v2012 = vmul.f32 %v1986, %v1986
    %v2013 = vmul.f32 %v2006, %v2006
    %v2014 = vadd.f32 %v2012, %v2013
    %2015 = vadd.xlane.f32.xlu0 %v2014
    %v2016 = vpop.xlane.xlu0 %2015
    %v2017 = vadd.f32 %v1753, %v2016
    %v2018 = vmul.f32 %v2011, %v200
    %v2019 = vmul.f32 %v2017, %v200
    %v2020 = vmul.f32 %v2018, %v2018
    %v2021 = vsub.f32 %v2019, %v2020
    %v2022 = vld [vmem:[%s12] sm:$0xff]
    %v2023 = vadd.f32 %v2021, 1e-05
    %v2024 = vrsqrt.pop %v2023
    %v2025 = vmul.f32 %v2024, %v2023
    %v2026 = vmul.f32 %v2025, %v2024
    %v2027 = vmul.f32 0.5, %v2026
    %v2028 = vsub.f32 1.5, %v2027
    %v2029 = vmul.f32 %v2024, %v2028
    %vm2030 = vweird.f32 %v2023
    %vm2031 = vweird.f32 %v2024
    %vm2032 = vmor %vm2030, %vm2031
    %v2033 = vsel %vm2032, %v2024, %v2029
    %v2034 = vmul.f32 %v2022, %v2033
    %v2035 = vld [vmem:[%s13] sm:$0xff]
    %v2036 = vmul.f32 %v2018, %v2034
    %v2037 = vsub.f32 %v2035, %v2036
    %2039 = vset.pattern.permute.xlu0 0
    %2040 = vperm.xlu0 %2039, %v2034
    %v2041 = vpop.permute.xlu0 %2040
    %2044 = vset.pattern.permute.xlu0 0
    %2045 = vperm.xlu0 %2044, %v2037
    %v2046 = vpop.permute.xlu0 %2045
    %v2048 = vmul.f32 %v1722, %v2041
    %v2049 = vmul.f32 %v1742, %v2041
    %v2050 = vadd.f32 %v2048, %v2046
    %v2051 = vadd.f32 %v2049, %v2046
    %v2052 = vld [vmem:[%s0] sm:$0xff]
    %v2053 = vld [vmem:[%s0 + $0x8] sm:$0xff]
    %v2054 = vadd.f32 %v2050, %v2052
    %v2055 = vadd.f32 %v2051, %v2053
    %2056 = vst [vmem:[#allocation3] sm:$0xff] %v2054
    %2057 = vst [vmem:[#allocation3 + $0x8] sm:$0xff] %v2055
    %v2058 = vmul.f32 %v1986, %v2041
    %v2059 = vmul.f32 %v2006, %v2041
    %v2060 = vadd.f32 %v2058, %v2046
    %v2061 = vadd.f32 %v2059, %v2046
    %v2062 = vld [vmem:[%s125] sm:$0xff]
    %v2063 = vld [vmem:[%s125 + $0x8] sm:$0xff]
    %v2064 = vadd.f32 %v2060, %v2062
    %v2065 = vadd.f32 %v2061, %v2063
    %s2066 = scalar_lea.vmem [#allocation3], 16
    %2067 = vst [vmem:[%s2066] sm:$0xff] %v2064
    %2068 = vst [vmem:[%s2066 + $0x8] sm:$0xff] %v2065
    // Predicated region
    $region58: #{tpu_custom_call.1} parent=1 // pred_check
      _
    $region59: #{tpu_custom_call.1} parent=1 // pred_check_branch
      %2070 = sbr.rel (0) target = $region61
    $region60: #{tpu_custom_call.1} parent=1 // pred_region
      %2072 = vsyncadd [#allocation4], 0
      %s2073 = sshll.u32 [#allocation3], 4
      %s2074 = int_to_ptr.vmem [resolvable:$true] %s2073
      %s2075 = sshll.u32 %s14, 4
      %s2076 = int_to_ptr.hbm [resolvable:$true] %s2075
      %2081 = dma.vmem_to_hbm [thread:$0]  %s2074, 512, %s2076, [#allocation4], 256, 256, 16
    $region61: #{tpu_custom_call.1} parent=1 // pred_fallthru
      _
    // Predicated region
    $region62: #{tpu_custom_call.1} parent=1 // pred_check
      _
    $region63: #{tpu_custom_call.1} parent=1 // pred_check_branch
      %2083 = sbr.rel (0) target = $region65
    $region64: #{tpu_custom_call.1} parent=1 // pred_region
      %2085 = dma.done [#allocation4], 512
    $region65: #{tpu_custom_call.1} parent=1 // pred_fallthru
      _
    %2086 = vsyncpa [#allocation4], 1

</llo_original>
